<compile_context>
chip_gen: v7x
topology: tpu7x:2x2x1
jax: 0.10.0
libtpu: 0.0.40
codegen_flags: <defaults>
</compile_context>

<pallas_src>
import numpy as np

import jax
import jax.numpy as jnp
from jax.experimental import pallas as pl
from jax.experimental.pallas import tpu as pltpu


# ----------------------------- fused kernel ---------------------------------

def _net_kernel(x_ref, w1_ref, b1_ref, w2_ref, b2_ref,
                wf1_ref, bf1_ref, wf2_ref, bf2_ref, o_ref):
    """Whole forward pass for one batch tile; everything stays resident in VMEM."""
    tb = o_ref.shape[0]
    bf16 = jnp.bfloat16

    # Input tile: 64 rows/image = 8 planes x 8 slots, 32 zero-padded columns.
    #   plane k in [0,4):  A_k[t] = input row 4t + k
    #   plane k in [4,8):  B_k[t] = input row 4(t+1) + (k-4)   (one-slot-shifted)
    x = x_ref[...].reshape(tb, 8, 8, 32)
    A0, A1, A2, A3, B0, B1, B2, B3 = [x[:, k] for k in range(8)]   # (tb, 8, 32)

    w1, b1 = w1_ref[...], b1_ref[...]

    def conv1_mm(pieces):
        # lhs rows = (image, t); K = 5 shifted input rows x 32 lanes = 160.
        xs = jnp.concatenate(pieces, axis=-1).reshape(tb * 8, 160).astype(bf16)
        y = jnp.dot(xs, w1, preferred_element_type=jnp.float32) + b1
        return jnp.maximum(y[:, :128], y[:, 128:])     # width pool (parity-major cols)

    # conv1 output row r = 4t + {0,1,2,3}; pooled row q = r // 2.
    y_r0 = conv1_mm([A0, A1, A2, A3, B0])              # r = 4t     (q = 2t,  upper)
    y_r1 = conv1_mm([A1, A2, A3, B0, B1])              # r = 4t + 1 (q = 2t,  lower)
    y_r2 = conv1_mm([A2, A3, B0, B1, B2])              # r = 4t + 2 (q = 2t+1, upper)
    y_r3 = conv1_mm([A3, B0, B1, B2, B3])              # r = 4t + 3 (q = 2t+1, lower)

    # height pool + relu (relu commutes with max); row slots t >= 6 are padding.
    p1e = jnp.maximum(jnp.maximum(y_r0, y_r1), 0.0).reshape(tb, 8, 128)  # q = 2t
    p1o = jnp.maximum(jnp.maximum(y_r2, y_r3), 0.0).reshape(tb, 8, 128)  # q = 2t+1

    # TODO(synk): nn.Dropout2d is a training-only op; eval-mode identity here.

    # conv2: K = 5 x 128 (whole p1 lane blocks -> only 128-aligned lane concats).
    E = [p1e[:, t0:t0 + 4] for t0 in range(3)]          # p1 rows 2*(q2 + t0)
    O = [p1o[:, t0:t0 + 4] for t0 in range(3)]          # p1 rows 2*(q2 + t0) + 1
    w2, b2 = w2_ref[...], b2_ref[...]

    def conv2_mm(pieces):
        xs = jnp.concatenate(pieces, axis=-1).reshape(tb * 4, 640).astype(bf16)
        y = jnp.dot(xs, w2, preferred_element_type=jnp.float32) + b2
        return jnp.maximum(y[:, :128], y[:, 128:])      # width pool

    y2_even = conv2_mm([E[0], O[0], E[1], O[1], E[2]])  # conv2 output rows 2*q2
    y2_odd = conv2_mm([O[0], E[1], O[1], E[2], O[2]])   # conv2 output rows 2*q2 + 1
    p2 = jnp.maximum(jnp.maximum(y2_even, y2_odd), 0.0)  # (tb*4, 128), row = (img, q2)

    # flatten (fc1 rows pre-permuted to this layout) + MLP head
    feats = p2.reshape(tb, 512).astype(bf16)
    h = jnp.dot(feats, wf1_ref[...], preferred_element_type=jnp.float32) + bf1_ref[...]
    h = jnp.maximum(h, 0.0).astype(bf16)
    # TODO(synk): F.dropout is a training-only op; eval-mode identity here.
    logits = jnp.dot(h, wf2_ref[...], preferred_element_type=jnp.float32) + bf2_ref[...]

    m = jnp.max(logits, axis=-1, keepdims=True)
    s = logits - m
    lse = jnp.log(jnp.sum(jnp.exp(s), axis=-1, keepdims=True))
    o_ref[...] = (s - lse).astype(o_ref.dtype)


# --------------------- one-time host-side weight lowering --------------------

def lower_params(params):
    """Re-layout PyTorch-format weights for the fused kernel (done once)."""
    w1 = np.asarray(params["w_conv1"], np.float32)     # (10, 1, 5, 5)
    b1 = np.asarray(params["b_conv1"], np.float32)     # (10,)
    w2 = np.asarray(params["w_conv2"], np.float32)     # (20, 10, 5, 5)
    b2 = np.asarray(params["b_conv2"], np.float32)     # (20,)
    wf1 = np.asarray(params["w_fc1"], np.float32)      # (50, 320)
    wf2 = np.asarray(params["w_fc2"], np.float32)      # (10, 50)

    # conv1: K = di*32 + p (row offset di, input col p; cols padded 28->32),
    #        N = parity*128 + m*10 + c   (output col j = 2m + parity, channel c).
    w1_low = np.zeros((160, 256), np.float32)
    b1_low = np.zeros((1, 256), np.float32)
    for j in range(24):
        m, par = j // 2, j % 2
        b1_low[0, par * 128 + m * 10: par * 128 + m * 10 + 10] = b1
        for di in range(5):
            for dj in range(5):
                w1_low[di * 32 + j + dj,
                       par * 128 + m * 10: par * 128 + m * 10 + 10] = w1[:, 0, di, dj]

    # conv2: K = di*128 + mi*10 + ci   (p1 row offset di, p1 col mi, channel ci),
    #        N = parity*128 + m2*20 + cc (output col j2 = 2*m2 + parity).
    w2_low = np.zeros((640, 256), np.float32)
    b2_low = np.zeros((1, 256), np.float32)
    for j2 in range(8):
        m2, par = j2 // 2, j2 % 2
        b2_low[0, par * 128 + m2 * 20: par * 128 + m2 * 20 + 20] = b2
        for di in range(5):
            for dj in range(5):
                mi = j2 + dj
                w2_low[di * 128 + mi * 10: di * 128 + mi * 10 + 10,
                       par * 128 + m2 * 20: par * 128 + m2 * 20 + 20] = w2[:, :, di, dj].T

    # fc1: kernel feature index = q2*128 + m2*20 + cc  (h = q2, w = m2, ch = cc);
    #      PyTorch NCHW flatten index = cc*16 + q2*4 + m2.
    wf1_low = np.zeros((512, 50), np.float32)
    for q2 in range(4):
        for m2 in range(4):
            for cc in range(20):
                wf1_low[q2 * 128 + m2 * 20 + cc, :] = wf1[:, cc * 16 + q2 * 4 + m2]

    bf16 = jnp.bfloat16
    return (jnp.asarray(w1_low, bf16), jnp.asarray(b1_low, jnp.float32),
            jnp.asarray(w2_low, bf16), jnp.asarray(b2_low, jnp.float32),
            jnp.asarray(wf1_low, bf16),
            jnp.asarray(params["b_fc1"], jnp.float32).reshape(1, 50),
            jnp.asarray(wf2.T, bf16),
            jnp.asarray(params["b_fc2"], jnp.float32).reshape(1, 10))


# ----------------------------- forward wrapper -------------------------------

def _prep_input(x_nchw, b_pad):
    """(B,1,28,28) -> (b_pad, 64, 32): 8 row planes (rows mod 4 + shifted copies)
    x 8 slots x 32 zero-padded columns per image."""
    b = x_nchw.shape[0]
    x = x_nchw.reshape(b, 28, 28).astype(jnp.float32)
    x = jnp.pad(x, ((0, b_pad - b), (0, 8), (0, 4)))    # rows 28->36, cols 28->32
    planes = [x[:, k:k + 32:4, :] for k in range(8)]    # each (b_pad, 8, 32)
    return jnp.stack(planes, axis=1).reshape(b_pad, 64, 32)


def net_forward(x_nchw, lowered, *, tile_b=128, vmem_limit_bytes=64 * 1024 * 1024):
    """x_nchw: (B, 1, 28, 28) float32 -> (B, 10) log-probabilities."""
    b = x_nchw.shape[0]
    # Batch tile: multiple of 8, default 128 (sweep 128/256 on v6e); keep >= 2
    # grid steps whenever the batch allows so both v7x TensorCores get work.
    half = 8 * pl.cdiv(pl.cdiv(b, 2), 8)
    tb = max(8, min(8 * pl.cdiv(tile_b, 8), half))
    b_pad = pl.cdiv(b, tb) * tb

    x = _prep_input(x_nchw, b_pad)

    weight_specs = [pl.BlockSpec(w.shape, lambda i: (0, 0)) for w in lowered]
    flops = int(b_pad) * 2 * (2 * 16 * 160 * 256 + 8 * 640 * 256 + 512 * 50 + 50 * 10)
    bytes_accessed = int(x.size) * 4 + int(b_pad) * 10 * 4 + sum(
        int(w.size) * w.dtype.itemsize for w in lowered)

    out = pl.pallas_call(
        _net_kernel,
        out_shape=jax.ShapeDtypeStruct((b_pad, 10), jnp.float32),
        grid=(b_pad // tb,),
        in_specs=[pl.BlockSpec((tb, 64, 32), lambda i: (i, 0, 0))] + weight_specs,
        out_specs=pl.BlockSpec((tb, 10), lambda i: (i, 0)),
        compiler_params=pltpu.CompilerParams(
            dimension_semantics=("parallel",),
            vmem_limit_bytes=int(vmem_limit_bytes)),
        cost_estimate=pl.CostEstimate(flops=flops, transcendentals=int(b_pad) * 11,
                                      bytes_accessed=int(bytes_accessed)),
    )(x, *lowered)
    return out[:b]


# ----------------------------- reference & init ------------------------------

def _reference_forward(x, p):
    """Plain-XLA reference of the PyTorch forward (eval mode)."""
    hi = jax.lax.Precision.HIGHEST
    dn = ("NCHW", "OIHW", "NCHW")
    y = jax.lax.conv_general_dilated(x, p["w_conv1"], (1, 1), "VALID",
                                     dimension_numbers=dn, precision=hi)
    y = y + p["b_conv1"][None, :, None, None]
    y = jax.lax.reduce_window(y, -jnp.inf, jax.lax.max, (1, 1, 2, 2), (1, 1, 2, 2), "VALID")
    y = jnp.maximum(y, 0.0)
    y = jax.lax.conv_general_dilated(y, p["w_conv2"], (1, 1), "VALID",
                                     dimension_numbers=dn, precision=hi)
    y = y + p["b_conv2"][None, :, None, None]
    y = jax.lax.reduce_window(y, -jnp.inf, jax.lax.max, (1, 1, 2, 2), (1, 1, 2, 2), "VALID")
    y = jnp.maximum(y, 0.0)
    y = y.reshape(y.shape[0], 320)
    y = jnp.maximum(jnp.dot(y, p["w_fc1"].T, precision=hi) + p["b_fc1"], 0.0)
    y = jnp.dot(y, p["w_fc2"].T, precision=hi) + p["b_fc2"]
    return jax.nn.log_softmax(y, axis=-1)


def init_params(key):
    ks = jax.random.split(key, 8)
    def u(k, shape, fan_in):
        bound = 1.0 / jnp.sqrt(fan_in)
        return jax.random.uniform(k, shape, jnp.float32, -bound, bound)
    return {
        "w_conv1": u(ks[0], (10, 1, 5, 5), 1 * 5 * 5),
        "b_conv1": u(ks[1], (10,), 1 * 5 * 5),
        "w_conv2": u(ks[2], (20, 10, 5, 5), 10 * 5 * 5),
        "b_conv2": u(ks[3], (20,), 10 * 5 * 5),
        "w_fc1":   u(ks[4], (50, 320), 320),   # PyTorch Linear: (out, in)
        "b_fc1":   u(ks[5], (50,), 320),
        "w_fc2":   u(ks[6], (10, 50), 50),
        "b_fc2":   u(ks[7], (10,), 50),
    }


if __name__ == "__main__":
    key = jax.random.PRNGKey(0)
    k_x, k_x2, k_p = jax.random.split(key, 3)
    params = init_params(k_p)
    lowered = lower_params(params)          # one-time host-side weight re-layout

    # Input shape implied by the 320-feature flatten: (B, 1, 28, 28).
    x = jax.random.normal(k_x, (2, 1, 28, 28), jnp.float32)
    out = jax.block_until_ready(net_forward(x, lowered))
    assert out.shape == (2, 10)
    # rows must be valid log-probabilities
    assert bool(jnp.all(jnp.abs(jnp.sum(jnp.exp(out), axis=1) - 1.0) < 1e-4))
    ref = jax.block_until_ready(_reference_forward(x, params))
    err = float(jnp.max(jnp.abs(out - ref)))
    assert err < 5e-2, err

    # Larger batch exercising the recommended configuration (tile_b=128, 2 grid
    # steps -> both TensorCores on v7x).
    xb = jax.random.normal(k_x2, (256, 1, 28, 28), jnp.float32)
    outb = jax.block_until_ready(net_forward(xb, lowered))
    errb = float(jnp.max(jnp.abs(outb - _reference_forward(xb, params))))
    assert errb < 5e-2, errb

    print("KERNEL_OK")
</pallas_src>

<mosaic_0001>
module attributes {stable_mosaic.version = 11 : i64} {
  func.func @_net_kernel(%arg0: i32, %arg1: memref<8x64x32xf32, #tpu.memory_space<vmem>>, %arg2: memref<160x256xbf16, #tpu.memory_space<vmem>>, %arg3: memref<1x256xf32, #tpu.memory_space<vmem>>, %arg4: memref<640x256xbf16, #tpu.memory_space<vmem>>, %arg5: memref<1x256xf32, #tpu.memory_space<vmem>>, %arg6: memref<512x50xbf16, #tpu.memory_space<vmem>>, %arg7: memref<1x50xf32, #tpu.memory_space<vmem>>, %arg8: memref<50x10xbf16, #tpu.memory_space<vmem>>, %arg9: memref<1x10xf32, #tpu.memory_space<vmem>>, %arg10: memref<8x10xf32, #tpu.memory_space<vmem>>) attributes {dimension_semantics = [#tpu.dimension_semantics<parallel>], iteration_bounds = array<i64: 1>, scalar_prefetch = 0 : i64, scratch_operands = 0 : i64, tpu.core_type = #tpu.core_type<tc>, window_params = [{transform_indices = @transform_0, window_bounds = array<i64: 8, 64, 32>}, {pipeline_mode = #tpu.pipeline_mode<synchronous>, transform_indices = @transform_1, window_bounds = array<i64: 160, 256>}, {pipeline_mode = #tpu.pipeline_mode<synchronous>, transform_indices = @transform_2, window_bounds = array<i64: 1, 256>}, {pipeline_mode = #tpu.pipeline_mode<synchronous>, transform_indices = @transform_3, window_bounds = array<i64: 640, 256>}, {pipeline_mode = #tpu.pipeline_mode<synchronous>, transform_indices = @transform_4, window_bounds = array<i64: 1, 256>}, {pipeline_mode = #tpu.pipeline_mode<synchronous>, transform_indices = @transform_5, window_bounds = array<i64: 512, 50>}, {pipeline_mode = #tpu.pipeline_mode<synchronous>, transform_indices = @transform_6, window_bounds = array<i64: 1, 50>}, {pipeline_mode = #tpu.pipeline_mode<synchronous>, transform_indices = @transform_7, window_bounds = array<i64: 50, 10>}, {pipeline_mode = #tpu.pipeline_mode<synchronous>, transform_indices = @transform_8, window_bounds = array<i64: 1, 10>}, {transform_indices = @transform_9, window_bounds = array<i64: 8, 10>}]} {
    %c0 = arith.constant 0 : index
    %c0_0 = arith.constant 0 : index
    %c0_1 = arith.constant 0 : index
    %0 = vector.load %arg1[%c0, %c0_0, %c0_1] : memref<8x64x32xf32, #tpu.memory_space<vmem>>, vector<8x64x32xf32>
    %1 = vector.shape_cast %0 : vector<8x64x32xf32> to vector<8x8x8x32xf32>
    %2 = vector.extract_strided_slice %1 {offsets = [0, 0, 0, 0], sizes = [8, 1, 8, 32], strides = [1, 1, 1, 1]} : vector<8x8x8x32xf32> to vector<8x1x8x32xf32>
    %3 = vector.shape_cast %2 : vector<8x1x8x32xf32> to vector<8x8x32xf32>
    %4 = vector.extract_strided_slice %1 {offsets = [0, 1, 0, 0], sizes = [8, 1, 8, 32], strides = [1, 1, 1, 1]} : vector<8x8x8x32xf32> to vector<8x1x8x32xf32>
    %5 = vector.shape_cast %4 : vector<8x1x8x32xf32> to vector<8x8x32xf32>
    %6 = vector.extract_strided_slice %1 {offsets = [0, 2, 0, 0], sizes = [8, 1, 8, 32], strides = [1, 1, 1, 1]} : vector<8x8x8x32xf32> to vector<8x1x8x32xf32>
    %7 = vector.shape_cast %6 : vector<8x1x8x32xf32> to vector<8x8x32xf32>
    %8 = vector.extract_strided_slice %1 {offsets = [0, 3, 0, 0], sizes = [8, 1, 8, 32], strides = [1, 1, 1, 1]} : vector<8x8x8x32xf32> to vector<8x1x8x32xf32>
    %9 = vector.shape_cast %8 : vector<8x1x8x32xf32> to vector<8x8x32xf32>
    %10 = vector.extract_strided_slice %1 {offsets = [0, 4, 0, 0], sizes = [8, 1, 8, 32], strides = [1, 1, 1, 1]} : vector<8x8x8x32xf32> to vector<8x1x8x32xf32>
    %11 = vector.shape_cast %10 : vector<8x1x8x32xf32> to vector<8x8x32xf32>
    %12 = vector.extract_strided_slice %1 {offsets = [0, 5, 0, 0], sizes = [8, 1, 8, 32], strides = [1, 1, 1, 1]} : vector<8x8x8x32xf32> to vector<8x1x8x32xf32>
    %13 = vector.shape_cast %12 : vector<8x1x8x32xf32> to vector<8x8x32xf32>
    %14 = vector.extract_strided_slice %1 {offsets = [0, 6, 0, 0], sizes = [8, 1, 8, 32], strides = [1, 1, 1, 1]} : vector<8x8x8x32xf32> to vector<8x1x8x32xf32>
    %15 = vector.shape_cast %14 : vector<8x1x8x32xf32> to vector<8x8x32xf32>
    %16 = vector.extract_strided_slice %1 {offsets = [0, 7, 0, 0], sizes = [8, 1, 8, 32], strides = [1, 1, 1, 1]} : vector<8x8x8x32xf32> to vector<8x1x8x32xf32>
    %17 = vector.shape_cast %16 : vector<8x1x8x32xf32> to vector<8x8x32xf32>
    %c0_2 = arith.constant 0 : index
    %c0_3 = arith.constant 0 : index
    %18 = vector.load %arg2[%c0_2, %c0_3] : memref<160x256xbf16, #tpu.memory_space<vmem>>, vector<160x256xbf16>
    %c0_4 = arith.constant 0 : index
    %c0_5 = arith.constant 0 : index
    %19 = vector.load %arg3[%c0_4, %c0_5] : memref<1x256xf32, #tpu.memory_space<vmem>>, vector<1x256xf32>
    %20 = tpu.concatenate %3, %5, %7, %9, %11 in 2 : vector<8x8x32xf32>, vector<8x8x32xf32>, vector<8x8x32xf32>, vector<8x8x32xf32>, vector<8x8x32xf32> -> vector<8x8x160xf32>
    %21 = vector.shape_cast %20 : vector<8x8x160xf32> to vector<64x160xf32>
    %22 = arith.truncf %21 : vector<64x160xf32> to vector<64x160xbf16>
    %cst = arith.constant dense<0.000000e+00> : vector<64x256xf32>
    %23 = tpu.matmul %22, %18, %cst {dimension_numbers = #tpu.dot_dimension_numbers<[1], [0], [0], [1], [0, 0, 1, 1], [], []>} : vector<64x160xbf16>, vector<160x256xbf16>, vector<64x256xf32> -> vector<64x256xf32>
    %24 = vector.broadcast %19 : vector<1x256xf32> to vector<64x256xf32>
    %25 = arith.addf %23, %24 : vector<64x256xf32>
    %26 = vector.extract_strided_slice %25 {offsets = [0, 0], sizes = [64, 128], strides = [1, 1]} : vector<64x256xf32> to vector<64x128xf32>
    %27 = vector.extract_strided_slice %25 {offsets = [0, 128], sizes = [64, 128], strides = [1, 1]} : vector<64x256xf32> to vector<64x128xf32>
    %28 = arith.maximumf %26, %27 : vector<64x128xf32>
    %29 = tpu.concatenate %5, %7, %9, %11, %13 in 2 : vector<8x8x32xf32>, vector<8x8x32xf32>, vector<8x8x32xf32>, vector<8x8x32xf32>, vector<8x8x32xf32> -> vector<8x8x160xf32>
    %30 = vector.shape_cast %29 : vector<8x8x160xf32> to vector<64x160xf32>
    %31 = arith.truncf %30 : vector<64x160xf32> to vector<64x160xbf16>
    %cst_6 = arith.constant dense<0.000000e+00> : vector<64x256xf32>
    %32 = tpu.matmul %31, %18, %cst_6 {dimension_numbers = #tpu.dot_dimension_numbers<[1], [0], [0], [1], [0, 0, 1, 1], [], []>} : vector<64x160xbf16>, vector<160x256xbf16>, vector<64x256xf32> -> vector<64x256xf32>
    %33 = vector.broadcast %19 : vector<1x256xf32> to vector<64x256xf32>
    %34 = arith.addf %32, %33 : vector<64x256xf32>
    %35 = vector.extract_strided_slice %34 {offsets = [0, 0], sizes = [64, 128], strides = [1, 1]} : vector<64x256xf32> to vector<64x128xf32>
    %36 = vector.extract_strided_slice %34 {offsets = [0, 128], sizes = [64, 128], strides = [1, 1]} : vector<64x256xf32> to vector<64x128xf32>
    %37 = arith.maximumf %35, %36 : vector<64x128xf32>
    %38 = tpu.concatenate %7, %9, %11, %13, %15 in 2 : vector<8x8x32xf32>, vector<8x8x32xf32>, vector<8x8x32xf32>, vector<8x8x32xf32>, vector<8x8x32xf32> -> vector<8x8x160xf32>
    %39 = vector.shape_cast %38 : vector<8x8x160xf32> to vector<64x160xf32>
    %40 = arith.truncf %39 : vector<64x160xf32> to vector<64x160xbf16>
    %cst_7 = arith.constant dense<0.000000e+00> : vector<64x256xf32>
    %41 = tpu.matmul %40, %18, %cst_7 {dimension_numbers = #tpu.dot_dimension_numbers<[1], [0], [0], [1], [0, 0, 1, 1], [], []>} : vector<64x160xbf16>, vector<160x256xbf16>, vector<64x256xf32> -> vector<64x256xf32>
    %42 = vector.broadcast %19 : vector<1x256xf32> to vector<64x256xf32>
    %43 = arith.addf %41, %42 : vector<64x256xf32>
    %44 = vector.extract_strided_slice %43 {offsets = [0, 0], sizes = [64, 128], strides = [1, 1]} : vector<64x256xf32> to vector<64x128xf32>
    %45 = vector.extract_strided_slice %43 {offsets = [0, 128], sizes = [64, 128], strides = [1, 1]} : vector<64x256xf32> to vector<64x128xf32>
    %46 = arith.maximumf %44, %45 : vector<64x128xf32>
    %47 = tpu.concatenate %9, %11, %13, %15, %17 in 2 : vector<8x8x32xf32>, vector<8x8x32xf32>, vector<8x8x32xf32>, vector<8x8x32xf32>, vector<8x8x32xf32> -> vector<8x8x160xf32>
    %48 = vector.shape_cast %47 : vector<8x8x160xf32> to vector<64x160xf32>
    %49 = arith.truncf %48 : vector<64x160xf32> to vector<64x160xbf16>
    %cst_8 = arith.constant dense<0.000000e+00> : vector<64x256xf32>
    %50 = tpu.matmul %49, %18, %cst_8 {dimension_numbers = #tpu.dot_dimension_numbers<[1], [0], [0], [1], [0, 0, 1, 1], [], []>} : vector<64x160xbf16>, vector<160x256xbf16>, vector<64x256xf32> -> vector<64x256xf32>
    %51 = vector.broadcast %19 : vector<1x256xf32> to vector<64x256xf32>
    %52 = arith.addf %50, %51 : vector<64x256xf32>
    %53 = vector.extract_strided_slice %52 {offsets = [0, 0], sizes = [64, 128], strides = [1, 1]} : vector<64x256xf32> to vector<64x128xf32>
    %54 = vector.extract_strided_slice %52 {offsets = [0, 128], sizes = [64, 128], strides = [1, 1]} : vector<64x256xf32> to vector<64x128xf32>
    %55 = arith.maximumf %53, %54 : vector<64x128xf32>
    %56 = arith.maximumf %28, %37 : vector<64x128xf32>
    %cst_9 = arith.constant 0.000000e+00 : f32
    %57 = vector.broadcast %cst_9 : f32 to vector<64x128xf32>
    %58 = arith.maximumf %56, %57 : vector<64x128xf32>
    %59 = vector.shape_cast %58 : vector<64x128xf32> to vector<8x8x128xf32>
    %60 = arith.maximumf %46, %55 : vector<64x128xf32>
    %cst_10 = arith.constant 0.000000e+00 : f32
    %61 = vector.broadcast %cst_10 : f32 to vector<64x128xf32>
    %62 = arith.maximumf %60, %61 : vector<64x128xf32>
    %63 = vector.shape_cast %62 : vector<64x128xf32> to vector<8x8x128xf32>
    %64 = vector.extract_strided_slice %59 {offsets = [0, 0, 0], sizes = [8, 4, 128], strides = [1, 1, 1]} : vector<8x8x128xf32> to vector<8x4x128xf32>
    %65 = vector.extract_strided_slice %59 {offsets = [0, 1, 0], sizes = [8, 4, 128], strides = [1, 1, 1]} : vector<8x8x128xf32> to vector<8x4x128xf32>
    %66 = vector.extract_strided_slice %59 {offsets = [0, 2, 0], sizes = [8, 4, 128], strides = [1, 1, 1]} : vector<8x8x128xf32> to vector<8x4x128xf32>
    %67 = vector.extract_strided_slice %63 {offsets = [0, 0, 0], sizes = [8, 4, 128], strides = [1, 1, 1]} : vector<8x8x128xf32> to vector<8x4x128xf32>
    %68 = vector.extract_strided_slice %63 {offsets = [0, 1, 0], sizes = [8, 4, 128], strides = [1, 1, 1]} : vector<8x8x128xf32> to vector<8x4x128xf32>
    %69 = vector.extract_strided_slice %63 {offsets = [0, 2, 0], sizes = [8, 4, 128], strides = [1, 1, 1]} : vector<8x8x128xf32> to vector<8x4x128xf32>
    %c0_11 = arith.constant 0 : index
    %c0_12 = arith.constant 0 : index
    %70 = vector.load %arg4[%c0_11, %c0_12] : memref<640x256xbf16, #tpu.memory_space<vmem>>, vector<640x256xbf16>
    %c0_13 = arith.constant 0 : index
    %c0_14 = arith.constant 0 : index
    %71 = vector.load %arg5[%c0_13, %c0_14] : memref<1x256xf32, #tpu.memory_space<vmem>>, vector<1x256xf32>
    %72 = tpu.concatenate %64, %67, %65, %68, %66 in 2 : vector<8x4x128xf32>, vector<8x4x128xf32>, vector<8x4x128xf32>, vector<8x4x128xf32>, vector<8x4x128xf32> -> vector<8x4x640xf32>
    %73 = vector.shape_cast %72 : vector<8x4x640xf32> to vector<32x640xf32>
    %74 = arith.truncf %73 : vector<32x640xf32> to vector<32x640xbf16>
    %cst_15 = arith.constant dense<0.000000e+00> : vector<32x256xf32>
    %75 = tpu.matmul %74, %70, %cst_15 {dimension_numbers = #tpu.dot_dimension_numbers<[1], [0], [0], [1], [0, 0, 1, 1], [], []>} : vector<32x640xbf16>, vector<640x256xbf16>, vector<32x256xf32> -> vector<32x256xf32>
    %76 = vector.broadcast %71 : vector<1x256xf32> to vector<32x256xf32>
    %77 = arith.addf %75, %76 : vector<32x256xf32>
    %78 = vector.extract_strided_slice %77 {offsets = [0, 0], sizes = [32, 128], strides = [1, 1]} : vector<32x256xf32> to vector<32x128xf32>
    %79 = vector.extract_strided_slice %77 {offsets = [0, 128], sizes = [32, 128], strides = [1, 1]} : vector<32x256xf32> to vector<32x128xf32>
    %80 = arith.maximumf %78, %79 : vector<32x128xf32>
    %81 = tpu.concatenate %67, %65, %68, %66, %69 in 2 : vector<8x4x128xf32>, vector<8x4x128xf32>, vector<8x4x128xf32>, vector<8x4x128xf32>, vector<8x4x128xf32> -> vector<8x4x640xf32>
    %82 = vector.shape_cast %81 : vector<8x4x640xf32> to vector<32x640xf32>
    %83 = arith.truncf %82 : vector<32x640xf32> to vector<32x640xbf16>
    %cst_16 = arith.constant dense<0.000000e+00> : vector<32x256xf32>
    %84 = tpu.matmul %83, %70, %cst_16 {dimension_numbers = #tpu.dot_dimension_numbers<[1], [0], [0], [1], [0, 0, 1, 1], [], []>} : vector<32x640xbf16>, vector<640x256xbf16>, vector<32x256xf32> -> vector<32x256xf32>
    %85 = vector.broadcast %71 : vector<1x256xf32> to vector<32x256xf32>
    %86 = arith.addf %84, %85 : vector<32x256xf32>
    %87 = vector.extract_strided_slice %86 {offsets = [0, 0], sizes = [32, 128], strides = [1, 1]} : vector<32x256xf32> to vector<32x128xf32>
    %88 = vector.extract_strided_slice %86 {offsets = [0, 128], sizes = [32, 128], strides = [1, 1]} : vector<32x256xf32> to vector<32x128xf32>
    %89 = arith.maximumf %87, %88 : vector<32x128xf32>
    %90 = arith.maximumf %80, %89 : vector<32x128xf32>
    %cst_17 = arith.constant 0.000000e+00 : f32
    %91 = vector.broadcast %cst_17 : f32 to vector<32x128xf32>
    %92 = arith.maximumf %90, %91 : vector<32x128xf32>
    %93 = vector.shape_cast %92 : vector<32x128xf32> to vector<8x512xf32>
    %94 = arith.truncf %93 : vector<8x512xf32> to vector<8x512xbf16>
    %c0_18 = arith.constant 0 : index
    %c0_19 = arith.constant 0 : index
    %95 = vector.load %arg6[%c0_18, %c0_19] : memref<512x50xbf16, #tpu.memory_space<vmem>>, vector<512x50xbf16>
    %cst_20 = arith.constant dense<0.000000e+00> : vector<8x50xf32>
    %96 = tpu.matmul %94, %95, %cst_20 {dimension_numbers = #tpu.dot_dimension_numbers<[1], [0], [0], [1], [0, 0, 1, 1], [], []>} : vector<8x512xbf16>, vector<512x50xbf16>, vector<8x50xf32> -> vector<8x50xf32>
    %c0_21 = arith.constant 0 : index
    %c0_22 = arith.constant 0 : index
    %97 = vector.load %arg7[%c0_21, %c0_22] : memref<1x50xf32, #tpu.memory_space<vmem>>, vector<1x50xf32>
    %98 = vector.broadcast %97 : vector<1x50xf32> to vector<8x50xf32>
    %99 = arith.addf %96, %98 : vector<8x50xf32>
    %cst_23 = arith.constant 0.000000e+00 : f32
    %100 = vector.broadcast %cst_23 : f32 to vector<8x50xf32>
    %101 = arith.maximumf %99, %100 : vector<8x50xf32>
    %102 = arith.truncf %101 : vector<8x50xf32> to vector<8x50xbf16>
    %c0_24 = arith.constant 0 : index
    %c0_25 = arith.constant 0 : index
    %103 = vector.load %arg8[%c0_24, %c0_25] : memref<50x10xbf16, #tpu.memory_space<vmem>>, vector<50x10xbf16>
    %cst_26 = arith.constant dense<0.000000e+00> : vector<8x10xf32>
    %104 = tpu.matmul %102, %103, %cst_26 {dimension_numbers = #tpu.dot_dimension_numbers<[1], [0], [0], [1], [0, 0, 1, 1], [], []>} : vector<8x50xbf16>, vector<50x10xbf16>, vector<8x10xf32> -> vector<8x10xf32>
    %c0_27 = arith.constant 0 : index
    %c0_28 = arith.constant 0 : index
    %105 = vector.load %arg9[%c0_27, %c0_28] : memref<1x10xf32, #tpu.memory_space<vmem>>, vector<1x10xf32>
    %106 = vector.broadcast %105 : vector<1x10xf32> to vector<8x10xf32>
    %107 = arith.addf %104, %106 : vector<8x10xf32>
    %cst_29 = arith.constant dense<0xFF800000> : vector<8xf32>
    %108 = vector.multi_reduction <maximumf>, %107, %cst_29 [1] : vector<8x10xf32> to vector<8xf32>
    %109 = vector.shape_cast %108 : vector<8xf32> to vector<8x1xf32>
    %110 = vector.broadcast %109 : vector<8x1xf32> to vector<8x10xf32>
    %111 = arith.subf %107, %110 : vector<8x10xf32>
    %112 = math.exp %111 : vector<8x10xf32>
    %cst_30 = arith.constant dense<0.000000e+00> : vector<8xf32>
    %113 = vector.multi_reduction <add>, %112, %cst_30 [1] : vector<8x10xf32> to vector<8xf32>
    %114 = vector.shape_cast %113 : vector<8xf32> to vector<8x1xf32>
    %115 = math.log %114 : vector<8x1xf32>
    %116 = vector.broadcast %115 : vector<8x1xf32> to vector<8x10xf32>
    %117 = arith.subf %111, %116 : vector<8x10xf32>
    %c0_31 = arith.constant 0 : index
    %c0_32 = arith.constant 0 : index
    %118 = vector.load %arg10[%c0_31, %c0_32] : memref<8x10xf32, #tpu.memory_space<vmem>>, vector<8x10xf32>
    tpu.vector_store %arg10[%c0_31, %c0_32], %117 {strides = array<i32>} : memref<8x10xf32, #tpu.memory_space<vmem>>, vector<8x10xf32>,
    return
  }
  func.func @transform_0(%arg0: i32) -> (i32, i32, i32) {
    %c0_i32 = arith.constant 0 : i32
    %c0_i32_0 = arith.constant 0 : i32
    %c0_i32_1 = arith.constant 0 : i32
    return %arg0, %c0_i32, %c0_i32_0 : i32, i32, i32
  }
  func.func @transform_1(%arg0: i32) -> (i32, i32) {
    %c0_i32 = arith.constant 0 : i32
    %c0_i32_0 = arith.constant 0 : i32
    %c0_i32_1 = arith.constant 0 : i32
    return %c0_i32, %c0_i32_0 : i32, i32
  }
  func.func @transform_2(%arg0: i32) -> (i32, i32) {
    %c0_i32 = arith.constant 0 : i32
    %c0_i32_0 = arith.constant 0 : i32
    %c0_i32_1 = arith.constant 0 : i32
    return %c0_i32, %c0_i32_0 : i32, i32
  }
  func.func @transform_3(%arg0: i32) -> (i32, i32) {
    %c0_i32 = arith.constant 0 : i32
    %c0_i32_0 = arith.constant 0 : i32
    %c0_i32_1 = arith.constant 0 : i32
    return %c0_i32, %c0_i32_0 : i32, i32
  }
  func.func @transform_4(%arg0: i32) -> (i32, i32) {
    %c0_i32 = arith.constant 0 : i32
    %c0_i32_0 = arith.constant 0 : i32
    %c0_i32_1 = arith.constant 0 : i32
    return %c0_i32, %c0_i32_0 : i32, i32
  }
  func.func @transform_5(%arg0: i32) -> (i32, i32) {
    %c0_i32 = arith.constant 0 : i32
    %c0_i32_0 = arith.constant 0 : i32
    %c0_i32_1 = arith.constant 0 : i32
    return %c0_i32, %c0_i32_0 : i32, i32
  }
  func.func @transform_6(%arg0: i32) -> (i32, i32) {
    %c0_i32 = arith.constant 0 : i32
    %c0_i32_0 = arith.constant 0 : i32
    %c0_i32_1 = arith.constant 0 : i32
    return %c0_i32, %c0_i32_0 : i32, i32
  }
  func.func @transform_7(%arg0: i32) -> (i32, i32) {
    %c0_i32 = arith.constant 0 : i32
    %c0_i32_0 = arith.constant 0 : i32
    %c0_i32_1 = arith.constant 0 : i32
    return %c0_i32, %c0_i32_0 : i32, i32
  }
  func.func @transform_8(%arg0: i32) -> (i32, i32) {
    %c0_i32 = arith.constant 0 : i32
    %c0_i32_0 = arith.constant 0 : i32
    %c0_i32_1 = arith.constant 0 : i32
    return %c0_i32, %c0_i32_0 : i32, i32
  }
  func.func @transform_9(%arg0: i32) -> (i32, i32) {
    %c0_i32 = arith.constant 0 : i32
    %c0_i32_0 = arith.constant 0 : i32
    return %arg0, %c0_i32 : i32, i32
  }
}

</mosaic_0001>

<llo_original>
// kernel: tpu_custom_call.1
$region0: #{tpu_custom_call.1}
  #allocation0 [shape = 'u32[]', space=smem, size = 0x4, offset = 0x4, fixed_abs, tag = 'smem constant byte address 0x4 - core index']
  #allocation1 [shape = 'u32[144,128]{1,0:T(1,128)}', space=vmem, size = 0x12000, scoped, tag = 'internal scratch']
  %s0 = inlined_call_operand.hbm [shape: f32[8,64,32], index: 0, kind: input, shape index: {}]
  %s1 = inlined_call_operand.hbm [shape: bf16[160,256], index: 1, kind: input, shape index: {}]
  %s2 = inlined_call_operand.hbm [shape: f32[1,256], index: 2, kind: input, shape index: {}]
  %s3 = inlined_call_operand.hbm [shape: bf16[640,256], index: 3, kind: input, shape index: {}]
  %s4 = inlined_call_operand.hbm [shape: f32[1,256], index: 4, kind: input, shape index: {}]
  %s5 = inlined_call_operand.hbm [shape: bf16[512,50], index: 5, kind: input, shape index: {}]
  %s6 = inlined_call_operand.hbm [shape: f32[1,50], index: 6, kind: input, shape index: {}]
  %s7 = inlined_call_operand.hbm [shape: bf16[50,10], index: 7, kind: input, shape index: {}]
  %s8 = inlined_call_operand.hbm [shape: f32[1,10], index: 8, kind: input, shape index: {}]
  %s9 = inlined_call_operand.hbm [shape: f32[8,10], index: 9, kind: output, shape index: {}]
  %s10 = sld [smem:[#allocation0]]
  $region82: #{tpu_custom_call.1} parent=0
    _
  %s12 = ssub.s32 1, %s10
  %s13 = scalar_select 0, %s12, %s10
  $region1: #{tpu_custom_call.1} parent=0
    #allocation2 [shape = 'u8[262144]{0}', space=vmem, size = 0x40000, scoped, tag = 'input window, operand 0, single buffered']
    #allocation3 [shape = 's32[1]{0}', space=sflag, size = 0x4, scoped, tag = 'scoped memory for tpu_custom_call.1']
    #allocation4 [shape = 's32[1]{0}', space=sflag, size = 0x4, scoped, tag = 'scoped memory for tpu_custom_call.1']
    #allocation5 [shape = 'u8[81920]{0}', space=vmem, size = 0x14000, scoped, tag = 'input window, operand 1, single buffered']
    #allocation6 [shape = 's32[1]{0}', space=sflag, size = 0x4, scoped, tag = 'scoped memory for tpu_custom_call.1']
    #allocation7 [shape = 'u8[1024]{0}', space=vmem, size = 0x400, scoped, tag = 'input window, operand 2, single buffered']
    #allocation8 [shape = 'u8[327680]{0}', space=vmem, size = 0x50000, scoped, tag = 'input window, operand 3, single buffered']
    #allocation9 [shape = 's32[1]{0}', space=sflag, size = 0x4, scoped, tag = 'scoped memory for tpu_custom_call.1']
    #allocation10 [shape = 'u8[1024]{0}', space=vmem, size = 0x400, scoped, tag = 'input window, operand 4, single buffered']
    #allocation11 [shape = 'u8[131072]{0}', space=vmem, size = 0x20000, scoped, tag = 'input window, operand 5, single buffered']
    #allocation12 [shape = 's32[1]{0}', space=sflag, size = 0x4, scoped, tag = 'scoped memory for tpu_custom_call.1']
    #allocation13 [shape = 'u8[512]{0}', space=vmem, size = 0x400, scoped, tag = 'input window, operand 6, single buffered']
    #allocation14 [shape = 'u8[14336]{0}', space=vmem, size = 0x3800, scoped, tag = 'input window, operand 7, single buffered']
    #allocation15 [shape = 's32[1]{0}', space=sflag, size = 0x4, scoped, tag = 'scoped memory for tpu_custom_call.1']
    #allocation16 [shape = 'u8[512]{0}', space=vmem, size = 0x400, scoped, tag = 'input window, operand 8, single buffered']
    #allocation17 [shape = 'u8[4096]{0}', space=vmem, size = 0x1000, scoped, tag = 'output window, operand 0, single buffered']
    %14 = vsyncpa [#allocation3], 0
    %15 = vsyncpa [#allocation6], 0
    %16 = vsyncpa [#allocation9], 0
    %17 = vsyncpa [#allocation12], 0
    %18 = vsyncpa [#allocation15], 0
    %19 = vsyncpa [#allocation4], 0
    // Predicated region
    $region2: #{tpu_custom_call.1} parent=1 // pred_check
      _
    $region3: #{tpu_custom_call.1} parent=1 // pred_check_branch
      %21 = sbr.rel (0) target = $region5
    $region4: #{tpu_custom_call.1} parent=1 // pred_region
      %s23 = ssub.s32 8192, 8192
      %24 = vsyncadd [#allocation3], %s23
      %s25 = sshll.u32 [#allocation2], 4
      %s26 = int_to_ptr.vmem [resolvable:$true] %s25
      %31 = dma.hbm_to_vmem [thread:$0]  %s0, 8192, %s26, [#allocation3], 128, 128, 8
    $region5: #{tpu_custom_call.1} parent=1 // pred_fallthru
      _
    // Predicated region
    $region6: #{tpu_custom_call.1} parent=1 // pred_check
      _
    $region7: #{tpu_custom_call.1} parent=1 // pred_check_branch
      %33 = sbr.rel (0) target = $region9
    $region8: #{tpu_custom_call.1} parent=1 // pred_region
      %s35 = ssub.s32 2560, 2560
      %36 = vsyncadd [#allocation6], %s35
      %s37 = sshll.u32 [#allocation5], 4
      %s38 = int_to_ptr.vmem [resolvable:$true] %s37
      %43 = dma.hbm_to_vmem [thread:$0]  %s1, 2560, %s38, [#allocation6], 128, 128, 8
    $region9: #{tpu_custom_call.1} parent=1 // pred_fallthru
      _
    // Predicated region
    $region10: #{tpu_custom_call.1} parent=1 // pred_check
      _
    $region11: #{tpu_custom_call.1} parent=1 // pred_check_branch
      %45 = sbr.rel (0) target = $region13
    $region12: #{tpu_custom_call.1} parent=1 // pred_region
      %s47 = ssub.s32 32, 32
      %48 = vsyncadd [#allocation6], %s47
      %s50 = sshll.u32 [#allocation7], 4
      %s51 = int_to_ptr.vmem [resolvable:$true] %s50
      %53 = dma.hbm_to_vmem [thread:$0]  %s2, 32, %s51, [#allocation6]
    $region13: #{tpu_custom_call.1} parent=1 // pred_fallthru
      _
    // Predicated region
    $region14: #{tpu_custom_call.1} parent=1 // pred_check
      _
    $region15: #{tpu_custom_call.1} parent=1 // pred_check_branch
      %55 = sbr.rel (0) target = $region17
    $region16: #{tpu_custom_call.1} parent=1 // pred_region
      %s57 = ssub.s32 10240, 10240
      %58 = vsyncadd [#allocation9], %s57
      %s59 = sshll.u32 [#allocation8], 4
      %s60 = int_to_ptr.vmem [resolvable:$true] %s59
      %65 = dma.hbm_to_vmem [thread:$0]  %s3, 10240, %s60, [#allocation9], 128, 128, 8
    $region17: #{tpu_custom_call.1} parent=1 // pred_fallthru
      _
    // Predicated region
    $region18: #{tpu_custom_call.1} parent=1 // pred_check
      _
    $region19: #{tpu_custom_call.1} parent=1 // pred_check_branch
      %67 = sbr.rel (0) target = $region21
    $region20: #{tpu_custom_call.1} parent=1 // pred_region
      %s69 = ssub.s32 32, 32
      %70 = vsyncadd [#allocation9], %s69
      %s72 = sshll.u32 [#allocation10], 4
      %s73 = int_to_ptr.vmem [resolvable:$true] %s72
      %75 = dma.hbm_to_vmem [thread:$0]  %s4, 32, %s73, [#allocation9]
    $region21: #{tpu_custom_call.1} parent=1 // pred_fallthru
      _
    // Predicated region
    $region22: #{tpu_custom_call.1} parent=1 // pred_check
      _
    $region23: #{tpu_custom_call.1} parent=1 // pred_check_branch
      %77 = sbr.rel (0) target = $region25
    $region24: #{tpu_custom_call.1} parent=1 // pred_region
      %s79 = ssub.s32 4096, 4096
      %80 = vsyncadd [#allocation12], %s79
      %s81 = sshll.u32 [#allocation11], 4
      %s82 = int_to_ptr.vmem [resolvable:$true] %s81
      %87 = dma.hbm_to_vmem [thread:$0]  %s5, 4096, %s82, [#allocation12], 64, 64, 4
    $region25: #{tpu_custom_call.1} parent=1 // pred_fallthru
      _
    // Predicated region
    $region26: #{tpu_custom_call.1} parent=1 // pred_check
      _
    $region27: #{tpu_custom_call.1} parent=1 // pred_check_branch
      %89 = sbr.rel (0) target = $region29
    $region28: #{tpu_custom_call.1} parent=1 // pred_region
      %s91 = ssub.s32 16, 16
      %92 = vsyncadd [#allocation12], %s91
      %s94 = sshll.u32 [#allocation13], 4
      %s95 = int_to_ptr.vmem [resolvable:$true] %s94
      %97 = dma.hbm_to_vmem [thread:$0]  %s6, 16, %s95, [#allocation12]
    $region29: #{tpu_custom_call.1} parent=1 // pred_fallthru
      _
    // Predicated region
    $region30: #{tpu_custom_call.1} parent=1 // pred_check
      _
    $region31: #{tpu_custom_call.1} parent=1 // pred_check_branch
      %99 = sbr.rel (0) target = $region33
    $region32: #{tpu_custom_call.1} parent=1 // pred_region
      %s101 = ssub.s32 448, 448
      %102 = vsyncadd [#allocation15], %s101
      %s103 = sshll.u32 [#allocation14], 4
      %s104 = int_to_ptr.vmem [resolvable:$true] %s103
      %109 = dma.hbm_to_vmem [thread:$0]  %s7, 448, %s104, [#allocation15], 64, 64, 4
    $region33: #{tpu_custom_call.1} parent=1 // pred_fallthru
      _
    // Predicated region
    $region34: #{tpu_custom_call.1} parent=1 // pred_check
      _
    $region35: #{tpu_custom_call.1} parent=1 // pred_check_branch
      %111 = sbr.rel (0) target = $region37
    $region36: #{tpu_custom_call.1} parent=1 // pred_region
      %s113 = ssub.s32 16, 16
      %114 = vsyncadd [#allocation15], %s113
      %s116 = sshll.u32 [#allocation16], 4
      %s117 = int_to_ptr.vmem [resolvable:$true] %s116
      %119 = dma.hbm_to_vmem [thread:$0]  %s8, 16, %s117, [#allocation15]
    $region37: #{tpu_custom_call.1} parent=1 // pred_fallthru
      _
    // Predicated region
    $region38: #{tpu_custom_call.1} parent=1 // pred_check
      _
    $region39: #{tpu_custom_call.1} parent=1 // pred_check_branch
      %121 = sbr.rel (0) target = $region41
    $region40: #{tpu_custom_call.1} parent=1 // pred_region
      %122 = dma.done [#allocation3], 8192
    $region41: #{tpu_custom_call.1} parent=1 // pred_fallthru
      _
    // Predicated region
    $region42: #{tpu_custom_call.1} parent=1 // pred_check
      _
    $region43: #{tpu_custom_call.1} parent=1 // pred_check_branch
      %124 = sbr.rel (0) target = $region45
    $region44: #{tpu_custom_call.1} parent=1 // pred_region
      %125 = dma.done [#allocation6], 2560
    $region45: #{tpu_custom_call.1} parent=1 // pred_fallthru
      _
    // Predicated region
    $region46: #{tpu_custom_call.1} parent=1 // pred_check
      _
    $region47: #{tpu_custom_call.1} parent=1 // pred_check_branch
      %127 = sbr.rel (0) target = $region49
    $region48: #{tpu_custom_call.1} parent=1 // pred_region
      %128 = dma.done [#allocation6], 32
    $region49: #{tpu_custom_call.1} parent=1 // pred_fallthru
      _
    // Predicated region
    $region50: #{tpu_custom_call.1} parent=1 // pred_check
      _
    $region51: #{tpu_custom_call.1} parent=1 // pred_check_branch
      %130 = sbr.rel (0) target = $region53
    $region52: #{tpu_custom_call.1} parent=1 // pred_region
      %131 = dma.done [#allocation9], 10240
    $region53: #{tpu_custom_call.1} parent=1 // pred_fallthru
      _
    // Predicated region
    $region54: #{tpu_custom_call.1} parent=1 // pred_check
      _
    $region55: #{tpu_custom_call.1} parent=1 // pred_check_branch
      %133 = sbr.rel (0) target = $region57
    $region56: #{tpu_custom_call.1} parent=1 // pred_region
      %134 = dma.done [#allocation9], 32
    $region57: #{tpu_custom_call.1} parent=1 // pred_fallthru
      _
    // Predicated region
    $region58: #{tpu_custom_call.1} parent=1 // pred_check
      _
    $region59: #{tpu_custom_call.1} parent=1 // pred_check_branch
      %136 = sbr.rel (0) target = $region61
    $region60: #{tpu_custom_call.1} parent=1 // pred_region
      %137 = dma.done [#allocation12], 4096
    $region61: #{tpu_custom_call.1} parent=1 // pred_fallthru
      _
    // Predicated region
    $region62: #{tpu_custom_call.1} parent=1 // pred_check
      _
    $region63: #{tpu_custom_call.1} parent=1 // pred_check_branch
      %139 = sbr.rel (0) target = $region65
    $region64: #{tpu_custom_call.1} parent=1 // pred_region
      %140 = dma.done [#allocation12], 16
    $region65: #{tpu_custom_call.1} parent=1 // pred_fallthru
      _
    // Predicated region
    $region66: #{tpu_custom_call.1} parent=1 // pred_check
      _
    $region67: #{tpu_custom_call.1} parent=1 // pred_check_branch
      %142 = sbr.rel (0) target = $region69
    $region68: #{tpu_custom_call.1} parent=1 // pred_region
      %143 = dma.done [#allocation15], 448
    $region69: #{tpu_custom_call.1} parent=1 // pred_fallthru
      _
    // Predicated region
    $region70: #{tpu_custom_call.1} parent=1 // pred_check
      _
    $region71: #{tpu_custom_call.1} parent=1 // pred_check_branch
      %145 = sbr.rel (0) target = $region73
    $region72: #{tpu_custom_call.1} parent=1 // pred_region
      %146 = dma.done [#allocation15], 16
    $region73: #{tpu_custom_call.1} parent=1 // pred_fallthru
      _
    %v148 = vld [vmem:[#allocation2] sm:$0xff]
    %v149 = vld [vmem:[#allocation2 + $0x8] sm:$0xff]
    %v150 = vld [vmem:[#allocation2 + $0x10] sm:$0xff]
    %v151 = vld [vmem:[#allocation2 + $0x18] sm:$0xff]
    %v152 = vld [vmem:[#allocation2 + $0x20] sm:$0xff]
    %v153 = vld [vmem:[#allocation2 + $0x28] sm:$0xff]
    %v154 = vld [vmem:[#allocation2 + $0x30] sm:$0xff]
    %v155 = vld [vmem:[#allocation2 + $0x38] sm:$0xff]
    %v156 = vld [vmem:[#allocation2 + $0x40] sm:$0xff]
    %v157 = vld [vmem:[#allocation2 + $0x48] sm:$0xff]
    %v158 = vld [vmem:[#allocation2 + $0x50] sm:$0xff]
    %v159 = vld [vmem:[#allocation2 + $0x58] sm:$0xff]
    %v160 = vld [vmem:[#allocation2 + $0x60] sm:$0xff]
    %v161 = vld [vmem:[#allocation2 + $0x68] sm:$0xff]
    %v162 = vld [vmem:[#allocation2 + $0x70] sm:$0xff]
    %v163 = vld [vmem:[#allocation2 + $0x78] sm:$0xff]
    %v164 = vld [vmem:[#allocation2 + $0x80] sm:$0xff]
    %v165 = vld [vmem:[#allocation2 + $0x88] sm:$0xff]
    %v166 = vld [vmem:[#allocation2 + $0x90] sm:$0xff]
    %v167 = vld [vmem:[#allocation2 + $0x98] sm:$0xff]
    %v168 = vld [vmem:[#allocation2 + $0xa0] sm:$0xff]
    %v169 = vld [vmem:[#allocation2 + $0xa8] sm:$0xff]
    %v170 = vld [vmem:[#allocation2 + $0xb0] sm:$0xff]
    %v171 = vld [vmem:[#allocation2 + $0xb8] sm:$0xff]
    %v172 = vld [vmem:[#allocation2 + $0xc0] sm:$0xff]
    %v173 = vld [vmem:[#allocation2 + $0xc8] sm:$0xff]
    %v174 = vld [vmem:[#allocation2 + $0xd0] sm:$0xff]
    %v175 = vld [vmem:[#allocation2 + $0xd8] sm:$0xff]
    %v176 = vld [vmem:[#allocation2 + $0xe0] sm:$0xff]
    %v177 = vld [vmem:[#allocation2 + $0xe8] sm:$0xff]
    %v178 = vld [vmem:[#allocation2 + $0xf0] sm:$0xff]
    %v179 = vld [vmem:[#allocation2 + $0xf8] sm:$0xff]
    %v180 = vld [vmem:[#allocation2 + $0x100] sm:$0xff]
    %v181 = vld [vmem:[#allocation2 + $0x108] sm:$0xff]
    %v182 = vld [vmem:[#allocation2 + $0x110] sm:$0xff]
    %v183 = vld [vmem:[#allocation2 + $0x118] sm:$0xff]
    %v184 = vld [vmem:[#allocation2 + $0x120] sm:$0xff]
    %v185 = vld [vmem:[#allocation2 + $0x128] sm:$0xff]
    %v186 = vld [vmem:[#allocation2 + $0x130] sm:$0xff]
    %v187 = vld [vmem:[#allocation2 + $0x138] sm:$0xff]
    %v188 = vld [vmem:[#allocation2 + $0x140] sm:$0xff]
    %v189 = vld [vmem:[#allocation2 + $0x148] sm:$0xff]
    %v190 = vld [vmem:[#allocation2 + $0x150] sm:$0xff]
    %v191 = vld [vmem:[#allocation2 + $0x158] sm:$0xff]
    %v192 = vld [vmem:[#allocation2 + $0x160] sm:$0xff]
    %v193 = vld [vmem:[#allocation2 + $0x168] sm:$0xff]
    %v194 = vld [vmem:[#allocation2 + $0x170] sm:$0xff]
    %v195 = vld [vmem:[#allocation2 + $0x178] sm:$0xff]
    %v196 = vld [vmem:[#allocation2 + $0x180] sm:$0xff]
    %v197 = vld [vmem:[#allocation2 + $0x188] sm:$0xff]
    %v198 = vld [vmem:[#allocation2 + $0x190] sm:$0xff]
    %v199 = vld [vmem:[#allocation2 + $0x198] sm:$0xff]
    %v200 = vld [vmem:[#allocation2 + $0x1a0] sm:$0xff]
    %v201 = vld [vmem:[#allocation2 + $0x1a8] sm:$0xff]
    %v202 = vld [vmem:[#allocation2 + $0x1b0] sm:$0xff]
    %v203 = vld [vmem:[#allocation2 + $0x1b8] sm:$0xff]
    %v204 = vld [vmem:[#allocation2 + $0x1c0] sm:$0xff]
    %v205 = vld [vmem:[#allocation2 + $0x1c8] sm:$0xff]
    %v206 = vld [vmem:[#allocation2 + $0x1d0] sm:$0xff]
    %v207 = vld [vmem:[#allocation2 + $0x1d8] sm:$0xff]
    %v208 = vld [vmem:[#allocation2 + $0x1e0] sm:$0xff]
    %v209 = vld [vmem:[#allocation2 + $0x1e8] sm:$0xff]
    %v210 = vld [vmem:[#allocation2 + $0x1f0] sm:$0xff]
    %v211 = vld [vmem:[#allocation2 + $0x1f8] sm:$0xff]
    %v212 = vld [vmem:[#allocation5] sm:$0xff]
    %v213 = vld [vmem:[#allocation5 + $0x8] sm:$0xff]
    %v214 = vld [vmem:[#allocation5 + $0x10] sm:$0xff]
    %v215 = vld [vmem:[#allocation5 + $0x18] sm:$0xff]
    %v216 = vld [vmem:[#allocation5 + $0x20] sm:$0xff]
    %v217 = vld [vmem:[#allocation5 + $0x28] sm:$0xff]
    %v218 = vld [vmem:[#allocation5 + $0x30] sm:$0xff]
    %v219 = vld [vmem:[#allocation5 + $0x38] sm:$0xff]
    %v220 = vld [vmem:[#allocation5 + $0x40] sm:$0xff]
    %v221 = vld [vmem:[#allocation5 + $0x48] sm:$0xff]
    %v222 = vld [vmem:[#allocation5 + $0x50] sm:$0xff]
    %v223 = vld [vmem:[#allocation5 + $0x58] sm:$0xff]
    %v224 = vld [vmem:[#allocation5 + $0x60] sm:$0xff]
    %v225 = vld [vmem:[#allocation5 + $0x68] sm:$0xff]
    %v226 = vld [vmem:[#allocation5 + $0x70] sm:$0xff]
    %v227 = vld [vmem:[#allocation5 + $0x78] sm:$0xff]
    %v228 = vld [vmem:[#allocation5 + $0x80] sm:$0xff]
    %v229 = vld [vmem:[#allocation5 + $0x88] sm:$0xff]
    %v230 = vld [vmem:[#allocation5 + $0x90] sm:$0xff]
    %v231 = vld [vmem:[#allocation5 + $0x98] sm:$0xff]
    %v232 = vld [vmem:[#allocation7] sm:$0x3]
    %241 = vrot.lane.b32.xlu0 %v149, 32
    %v242 = vpop.permute.xlu0 %241
    %243 = vrot.lane.b32.xlu0 %v157, 32
    %v244 = vpop.permute.xlu0 %243
    %245 = vrot.lane.b32.xlu0 %v165, 32
    %v246 = vpop.permute.xlu0 %245
    %247 = vrot.lane.b32.xlu0 %v173, 32
    %v248 = vpop.permute.xlu0 %247
    %249 = vrot.lane.b32.xlu0 %v181, 32
    %v250 = vpop.permute.xlu0 %249
    %251 = vrot.lane.b32.xlu0 %v189, 32
    %v252 = vpop.permute.xlu0 %251
    %253 = vrot.lane.b32.xlu0 %v197, 32
    %v254 = vpop.permute.xlu0 %253
    %255 = vrot.lane.b32.xlu0 %v205, 32
    %v256 = vpop.permute.xlu0 %255
    %273 = vrot.lane.b32.xlu0 %v150, 64
    %v274 = vpop.permute.xlu0 %273
    %275 = vrot.lane.b32.xlu0 %v158, 64
    %v276 = vpop.permute.xlu0 %275
    %277 = vrot.lane.b32.xlu0 %v166, 64
    %v278 = vpop.permute.xlu0 %277
    %279 = vrot.lane.b32.xlu0 %v174, 64
    %v280 = vpop.permute.xlu0 %279
    %281 = vrot.lane.b32.xlu0 %v182, 64
    %v282 = vpop.permute.xlu0 %281
    %283 = vrot.lane.b32.xlu0 %v190, 64
    %v284 = vpop.permute.xlu0 %283
    %285 = vrot.lane.b32.xlu0 %v198, 64
    %v286 = vpop.permute.xlu0 %285
    %287 = vrot.lane.b32.xlu0 %v206, 64
    %v288 = vpop.permute.xlu0 %287
    %305 = vrot.lane.b32.xlu0 %v151, 96
    %v306 = vpop.permute.xlu0 %305
    %307 = vrot.lane.b32.xlu0 %v159, 96
    %v308 = vpop.permute.xlu0 %307
    %309 = vrot.lane.b32.xlu0 %v167, 96
    %v310 = vpop.permute.xlu0 %309
    %311 = vrot.lane.b32.xlu0 %v175, 96
    %v312 = vpop.permute.xlu0 %311
    %313 = vrot.lane.b32.xlu0 %v183, 96
    %v314 = vpop.permute.xlu0 %313
    %315 = vrot.lane.b32.xlu0 %v191, 96
    %v316 = vpop.permute.xlu0 %315
    %317 = vrot.lane.b32.xlu0 %v199, 96
    %v318 = vpop.permute.xlu0 %317
    %319 = vrot.lane.b32.xlu0 %v207, 96
    %v320 = vpop.permute.xlu0 %319
    %vm329 = vcmask 261120
    %v330 = vsel %vm329, %v148, %v242
    %v331 = vsel %vm329, %v156, %v244
    %v332 = vsel %vm329, %v164, %v246
    %v333 = vsel %vm329, %v172, %v248
    %v334 = vsel %vm329, %v180, %v250
    %v335 = vsel %vm329, %v188, %v252
    %v336 = vsel %vm329, %v196, %v254
    %v337 = vsel %vm329, %v204, %v256
    %vm338 = vcmask 523264
    %v339 = vsel %vm338, %v330, %v274
    %v340 = vsel %vm338, %v331, %v276
    %v341 = vsel %vm338, %v332, %v278
    %v342 = vsel %vm338, %v333, %v280
    %v343 = vsel %vm338, %v334, %v282
    %v344 = vsel %vm338, %v335, %v284
    %v345 = vsel %vm338, %v336, %v286
    %v346 = vsel %vm338, %v337, %v288
    %vm347 = vcmask 785408
    %v348 = vsel %vm347, %v339, %v306
    %v349 = vsel %vm347, %v340, %v308
    %v350 = vsel %vm347, %v341, %v310
    %v351 = vsel %vm347, %v342, %v312
    %v352 = vsel %vm347, %v343, %v314
    %v353 = vsel %vm347, %v344, %v316
    %v354 = vsel %vm347, %v345, %v318
    %v355 = vsel %vm347, %v346, %v320
    %v356 = vpack.c.bf16 %v349, %v348
    %v357 = vpack.c.bf16 %v160, %v152
    %v358 = vpack.c.bf16 %v351, %v350
    %v359 = vpack.c.bf16 %v176, %v168
    %v360 = vpack.c.bf16 %v353, %v352
    %v361 = vpack.c.bf16 %v192, %v184
    %v362 = vpack.c.bf16 %v355, %v354
    %v363 = vpack.c.bf16 %v208, %v200
    %v365 = vlaneseq
    %v366 = vshrl.u32 %v365, 7
    %v367 = vsub.s32 0, %v366
    %v368 = vrot.slane %v232, %v367
    %v369 = vlaneseq
    %v370 = vshrl.u32 %v369, 7
    %v371 = vsub.s32 1, %v370
    %v372 = vrot.slane %v232, %v371
    %v395 = vunpack.c.l.b16 %v212
    %v396 = vunpack.c.h.b16 %v212
    %v397 = vunpack.c.l.b16 %v213
    %v398 = vunpack.c.h.b16 %v213
    %v399 = vunpack.c.l.b16 %v214
    %v400 = vunpack.c.h.b16 %v214
    %v401 = vunpack.c.l.b16 %v215
    %v402 = vunpack.c.h.b16 %v215
    %v403 = vunpack.c.l.b16 %v216
    %v404 = vunpack.c.h.b16 %v216
    %v405 = vunpack.c.l.b16 %v217
    %v406 = vunpack.c.h.b16 %v217
    %v407 = vunpack.c.l.b16 %v218
    %v408 = vunpack.c.h.b16 %v218
    %v409 = vunpack.c.l.b16 %v219
    %v410 = vunpack.c.h.b16 %v219
    %v411 = vunpack.c.l.b16 %v220
    %v412 = vunpack.c.h.b16 %v220
    %v413 = vunpack.c.l.b16 %v221
    %v414 = vunpack.c.h.b16 %v221
    %v415 = vunpack.c.l.b16 %v222
    %v416 = vunpack.c.h.b16 %v222
    %v417 = vunpack.c.l.b16 %v223
    %v418 = vunpack.c.h.b16 %v223
    %v419 = vunpack.c.l.b16 %v224
    %v420 = vunpack.c.h.b16 %v224
    %v421 = vunpack.c.l.b16 %v225
    %v422 = vunpack.c.h.b16 %v225
    %v423 = vunpack.c.l.b16 %v226
    %v424 = vunpack.c.h.b16 %v226
    %v425 = vunpack.c.l.b16 %v227
    %v426 = vunpack.c.h.b16 %v227
    %v427 = vunpack.c.l.b16 %v228
    %v428 = vunpack.c.h.b16 %v228
    %v429 = vunpack.c.l.b16 %v229
    %v430 = vunpack.c.h.b16 %v229
    %v431 = vunpack.c.l.b16 %v230
    %v432 = vunpack.c.h.b16 %v230
    %v433 = vunpack.c.l.b16 %v231
    %v434 = vunpack.c.h.b16 %v231
    %v435 = vpack.c.b16 %v397, %v395
    %v436 = vpack.c.b16 %v398, %v396
    %v437 = vpack.c.b16 %v401, %v399
    %v438 = vpack.c.b16 %v402, %v400
    %v439 = vpack.c.b16 %v405, %v403
    %v440 = vpack.c.b16 %v406, %v404
    %v441 = vpack.c.b16 %v409, %v407
    %v442 = vpack.c.b16 %v410, %v408
    %v443 = vpack.c.b16 %v413, %v411
    %v444 = vpack.c.b16 %v414, %v412
    %v445 = vpack.c.b16 %v417, %v415
    %v446 = vpack.c.b16 %v418, %v416
    %v447 = vpack.c.b16 %v421, %v419
    %v448 = vpack.c.b16 %v422, %v420
    %v449 = vpack.c.b16 %v425, %v423
    %v450 = vpack.c.b16 %v426, %v424
    %v451 = vpack.c.b16 %v429, %v427
    %v452 = vpack.c.b16 %v430, %v428
    %v453 = vpack.c.b16 %v433, %v431
    %v454 = vpack.c.b16 %v434, %v432
    %v476 = vsel %vm329, %v357, 0
    %v479 = vsel %vm329, %v359, 0
    %v482 = vsel %vm329, %v361, 0
    %v485 = vsel %vm329, %v363, 0
    %487 = vmatprep.subr.bf16.mxu0 %v436
    %488 = vmatpush1.bf16.msra.mxu0 %v435
    %489 = vmatprep.subr.bf16.mxu0 %v438
    %490 = vmatpush1.bf16.msra.mxu0 %v437
    %491 = vmatprep.subr.bf16.mxu0 %v440
    %492 = vmatpush1.bf16.msra.mxu0 %v439
    %493 = vmatprep.subr.bf16.mxu0 %v442
    %494 = vmatpush1.bf16.msra.mxu0 %v441
    %495 = vmatprep.subr.bf16.mxu0 %v444
    %496 = vmatpush1.bf16.msra.mxu0 %v443
    %497 = vmatprep.subr.bf16.mxu0 %v446
    %498 = vmatpush1.bf16.msra.mxu0 %v445
    %499 = vmatprep.subr.bf16.mxu0 %v448
    %500 = vmatpush1.bf16.msra.mxu0 %v447
    %501 = vmatprep.subr.bf16.mxu0 %v450
    %502 = vmatpush1.bf16.msra.mxu0 %v449
    %503 = vmatprep.subr.bf16.mxu0 %v452
    %504 = vmatpush1.bf16.msra.mxu0 %v451
    %505 = vmatprep.subr.bf16.mxu0 %v454
    %506 = vmatpush1.bf16.msra.mxu0 %v453
    %507 = vmatprep.subr.bf16.mxu0 0
    %508 = vmatpush1.bf16.msra.mxu0 0
    %509 = vmatprep.subr.bf16.mxu0 0
    %510 = vmatpush1.bf16.msra.mxu0 0
    %511 = vmatprep.subr.bf16.mxu0 0
    %512 = vmatpush1.bf16.msra.mxu0 0
    %513 = vmatprep.subr.bf16.mxu0 0
    %514 = vmatpush1.bf16.msra.mxu0 0
    %515 = vmatprep.subr.bf16.mxu0 0
    %516 = vmatpush1.bf16.msra.mxu0 0
    %517 = vmatprep.subr.bf16.mxu0 0
    %518 = vmatpush1.bf16.msra.mxu0 0
    %519 = vmatprep.mubr.bf16.mxu0 %v476
    %520 = vmatmul.mubr.bf16.gmra.mrb[0].mxu0 %v356
    %v521 = vpop.f32.mrb[0].mxu0
    %v522 = vadd.f32 %v368, %v521
    %v523 = vpop.f32.mrb[0].mxu0
    %v524 = vadd.f32 %v372, %v523
    %v525 = vpop.f32.mrb[0].mxu0
    %v526 = vadd.f32 %v368, %v525
    %v527 = vpop.f32.mrb[0].mxu0
    %v528 = vadd.f32 %v372, %v527
    %529 = vmatprep.mubr.bf16.mxu0 %v479
    %530 = vmatmul.mubr.bf16.gmra.mrb[0].mxu0 %v358
    %v531 = vpop.f32.mrb[0].mxu0
    %v532 = vadd.f32 %v368, %v531
    %v533 = vpop.f32.mrb[0].mxu0
    %v534 = vadd.f32 %v372, %v533
    %v535 = vpop.f32.mrb[0].mxu0
    %v536 = vadd.f32 %v368, %v535
    %v537 = vpop.f32.mrb[0].mxu0
    %v538 = vadd.f32 %v372, %v537
    %539 = vmatprep.mubr.bf16.mxu0 %v482
    %540 = vmatmul.mubr.bf16.gmra.mrb[0].mxu0 %v360
    %v541 = vpop.f32.mrb[0].mxu0
    %v542 = vadd.f32 %v368, %v541
    %v543 = vpop.f32.mrb[0].mxu0
    %v544 = vadd.f32 %v372, %v543
    %v545 = vpop.f32.mrb[0].mxu0
    %v546 = vadd.f32 %v368, %v545
    %v547 = vpop.f32.mrb[0].mxu0
    %v548 = vadd.f32 %v372, %v547
    %549 = vmatprep.mubr.bf16.mxu0 %v485
    %550 = vmatmul.mubr.bf16.gmra.mrb[0].mxu0 %v362
    %v551 = vpop.f32.mrb[0].mxu0
    %v552 = vadd.f32 %v368, %v551
    %v553 = vpop.f32.mrb[0].mxu0
    %v554 = vadd.f32 %v372, %v553
    %v555 = vpop.f32.mrb[0].mxu0
    %v556 = vadd.f32 %v368, %v555
    %v557 = vpop.f32.mrb[0].mxu0
    %v558 = vadd.f32 %v372, %v557
    %559 = vdwg.mxu0
    %v560 = vmax.f32 %v522, %v524
    %v561 = vmax.f32 %v526, %v528
    %v562 = vmax.f32 %v532, %v534
    %v563 = vmax.f32 %v536, %v538
    %v564 = vmax.f32 %v542, %v544
    %v565 = vmax.f32 %v546, %v548
    %v566 = vmax.f32 %v552, %v554
    %v567 = vmax.f32 %v556, %v558
    %568 = vrot.lane.b32.xlu0 %v150, 32
    %v569 = vpop.permute.xlu0 %568
    %570 = vrot.lane.b32.xlu0 %v158, 32
    %v571 = vpop.permute.xlu0 %570
    %572 = vrot.lane.b32.xlu0 %v166, 32
    %v573 = vpop.permute.xlu0 %572
    %574 = vrot.lane.b32.xlu0 %v174, 32
    %v575 = vpop.permute.xlu0 %574
    %576 = vrot.lane.b32.xlu0 %v182, 32
    %v577 = vpop.permute.xlu0 %576
    %578 = vrot.lane.b32.xlu0 %v190, 32
    %v579 = vpop.permute.xlu0 %578
    %580 = vrot.lane.b32.xlu0 %v198, 32
    %v581 = vpop.permute.xlu0 %580
    %582 = vrot.lane.b32.xlu0 %v206, 32
    %v583 = vpop.permute.xlu0 %582
    %592 = vrot.lane.b32.xlu0 %v151, 64
    %v593 = vpop.permute.xlu0 %592
    %594 = vrot.lane.b32.xlu0 %v159, 64
    %v595 = vpop.permute.xlu0 %594
    %596 = vrot.lane.b32.xlu0 %v167, 64
    %v597 = vpop.permute.xlu0 %596
    %598 = vrot.lane.b32.xlu0 %v175, 64
    %v599 = vpop.permute.xlu0 %598
    %600 = vrot.lane.b32.xlu0 %v183, 64
    %v601 = vpop.permute.xlu0 %600
    %602 = vrot.lane.b32.xlu0 %v191, 64
    %v603 = vpop.permute.xlu0 %602
    %604 = vrot.lane.b32.xlu0 %v199, 64
    %v605 = vpop.permute.xlu0 %604
    %606 = vrot.lane.b32.xlu0 %v207, 64
    %v607 = vpop.permute.xlu0 %606
    %624 = vrot.lane.b32.xlu0 %v152, 96
    %v625 = vpop.permute.xlu0 %624
    %626 = vrot.lane.b32.xlu0 %v160, 96
    %v627 = vpop.permute.xlu0 %626
    %628 = vrot.lane.b32.xlu0 %v168, 96
    %v629 = vpop.permute.xlu0 %628
    %630 = vrot.lane.b32.xlu0 %v176, 96
    %v631 = vpop.permute.xlu0 %630
    %632 = vrot.lane.b32.xlu0 %v184, 96
    %v633 = vpop.permute.xlu0 %632
    %634 = vrot.lane.b32.xlu0 %v192, 96
    %v635 = vpop.permute.xlu0 %634
    %636 = vrot.lane.b32.xlu0 %v200, 96
    %v637 = vpop.permute.xlu0 %636
    %638 = vrot.lane.b32.xlu0 %v208, 96
    %v639 = vpop.permute.xlu0 %638
    %v648 = vsel %vm329, %v149, %v569
    %v649 = vsel %vm329, %v157, %v571
    %v650 = vsel %vm329, %v165, %v573
    %v651 = vsel %vm329, %v173, %v575
    %v652 = vsel %vm329, %v181, %v577
    %v653 = vsel %vm329, %v189, %v579
    %v654 = vsel %vm329, %v197, %v581
    %v655 = vsel %vm329, %v205, %v583
    %v656 = vsel %vm338, %v648, %v593
    %v657 = vsel %vm338, %v649, %v595
    %v658 = vsel %vm338, %v650, %v597
    %v659 = vsel %vm338, %v651, %v599
    %v660 = vsel %vm338, %v652, %v601
    %v661 = vsel %vm338, %v653, %v603
    %v662 = vsel %vm338, %v654, %v605
    %v663 = vsel %vm338, %v655, %v607
    %v664 = vsel %vm347, %v656, %v625
    %v665 = vsel %vm347, %v657, %v627
    %v666 = vsel %vm347, %v658, %v629
    %v667 = vsel %vm347, %v659, %v631
    %v668 = vsel %vm347, %v660, %v633
    %v669 = vsel %vm347, %v661, %v635
    %v670 = vsel %vm347, %v662, %v637
    %v671 = vsel %vm347, %v663, %v639
    %v672 = vpack.c.bf16 %v665, %v664
    %v673 = vpack.c.bf16 %v161, %v153
    %v674 = vpack.c.bf16 %v667, %v666
    %v675 = vpack.c.bf16 %v177, %v169
    %v676 = vpack.c.bf16 %v669, %v668
    %v677 = vpack.c.bf16 %v193, %v185
    %v678 = vpack.c.bf16 %v671, %v670
    %v679 = vpack.c.bf16 %v209, %v201
    %v681 = vsel %vm329, %v673, 0
    %v684 = vsel %vm329, %v675, 0
    %v687 = vsel %vm329, %v677, 0
    %v690 = vsel %vm329, %v679, 0
    %692 = vmatprep.subr.bf16.mxu0 %v436
    %693 = vmatpush1.bf16.msra.mxu0 %v435
    %694 = vmatprep.subr.bf16.mxu0 %v438
    %695 = vmatpush1.bf16.msra.mxu0 %v437
    %696 = vmatprep.subr.bf16.mxu0 %v440
    %697 = vmatpush1.bf16.msra.mxu0 %v439
    %698 = vmatprep.subr.bf16.mxu0 %v442
    %699 = vmatpush1.bf16.msra.mxu0 %v441
    %700 = vmatprep.subr.bf16.mxu0 %v444
    %701 = vmatpush1.bf16.msra.mxu0 %v443
    %702 = vmatprep.subr.bf16.mxu0 %v446
    %703 = vmatpush1.bf16.msra.mxu0 %v445
    %704 = vmatprep.subr.bf16.mxu0 %v448
    %705 = vmatpush1.bf16.msra.mxu0 %v447
    %706 = vmatprep.subr.bf16.mxu0 %v450
    %707 = vmatpush1.bf16.msra.mxu0 %v449
    %708 = vmatprep.subr.bf16.mxu0 %v452
    %709 = vmatpush1.bf16.msra.mxu0 %v451
    %710 = vmatprep.subr.bf16.mxu0 %v454
    %711 = vmatpush1.bf16.msra.mxu0 %v453
    %712 = vmatprep.subr.bf16.mxu0 0
    %713 = vmatpush1.bf16.msra.mxu0 0
    %714 = vmatprep.subr.bf16.mxu0 0
    %715 = vmatpush1.bf16.msra.mxu0 0
    %716 = vmatprep.subr.bf16.mxu0 0
    %717 = vmatpush1.bf16.msra.mxu0 0
    %718 = vmatprep.subr.bf16.mxu0 0
    %719 = vmatpush1.bf16.msra.mxu0 0
    %720 = vmatprep.subr.bf16.mxu0 0
    %721 = vmatpush1.bf16.msra.mxu0 0
    %722 = vmatprep.subr.bf16.mxu0 0
    %723 = vmatpush1.bf16.msra.mxu0 0
    %724 = vmatprep.mubr.bf16.mxu0 %v681
    %725 = vmatmul.mubr.bf16.gmra.mrb[0].mxu0 %v672
    %v726 = vpop.f32.mrb[0].mxu0
    %v727 = vadd.f32 %v368, %v726
    %v728 = vpop.f32.mrb[0].mxu0
    %v729 = vadd.f32 %v372, %v728
    %v730 = vpop.f32.mrb[0].mxu0
    %v731 = vadd.f32 %v368, %v730
    %v732 = vpop.f32.mrb[0].mxu0
    %v733 = vadd.f32 %v372, %v732
    %734 = vmatprep.mubr.bf16.mxu0 %v684
    %735 = vmatmul.mubr.bf16.gmra.mrb[0].mxu0 %v674
    %v736 = vpop.f32.mrb[0].mxu0
    %v737 = vadd.f32 %v368, %v736
    %v738 = vpop.f32.mrb[0].mxu0
    %v739 = vadd.f32 %v372, %v738
    %v740 = vpop.f32.mrb[0].mxu0
    %v741 = vadd.f32 %v368, %v740
    %v742 = vpop.f32.mrb[0].mxu0
    %v743 = vadd.f32 %v372, %v742
    %744 = vmatprep.mubr.bf16.mxu0 %v687
    %745 = vmatmul.mubr.bf16.gmra.mrb[0].mxu0 %v676
    %v746 = vpop.f32.mrb[0].mxu0
    %v747 = vadd.f32 %v368, %v746
    %v748 = vpop.f32.mrb[0].mxu0
    %v749 = vadd.f32 %v372, %v748
    %v750 = vpop.f32.mrb[0].mxu0
    %v751 = vadd.f32 %v368, %v750
    %v752 = vpop.f32.mrb[0].mxu0
    %v753 = vadd.f32 %v372, %v752
    %754 = vmatprep.mubr.bf16.mxu0 %v690
    %755 = vmatmul.mubr.bf16.gmra.mrb[0].mxu0 %v678
    %v756 = vpop.f32.mrb[0].mxu0
    %v757 = vadd.f32 %v368, %v756
    %v758 = vpop.f32.mrb[0].mxu0
    %v759 = vadd.f32 %v372, %v758
    %v760 = vpop.f32.mrb[0].mxu0
    %v761 = vadd.f32 %v368, %v760
    %v762 = vpop.f32.mrb[0].mxu0
    %v763 = vadd.f32 %v372, %v762
    %764 = vdwg.mxu0
    %v765 = vmax.f32 %v727, %v729
    %v766 = vmax.f32 %v731, %v733
    %v767 = vmax.f32 %v737, %v739
    %v768 = vmax.f32 %v741, %v743
    %v769 = vmax.f32 %v747, %v749
    %v770 = vmax.f32 %v751, %v753
    %v771 = vmax.f32 %v757, %v759
    %v772 = vmax.f32 %v761, %v763
    %773 = vrot.lane.b32.xlu0 %v151, 32
    %v774 = vpop.permute.xlu0 %773
    %775 = vrot.lane.b32.xlu0 %v159, 32
    %v776 = vpop.permute.xlu0 %775
    %777 = vrot.lane.b32.xlu0 %v167, 32
    %v778 = vpop.permute.xlu0 %777
    %779 = vrot.lane.b32.xlu0 %v175, 32
    %v780 = vpop.permute.xlu0 %779
    %781 = vrot.lane.b32.xlu0 %v183, 32
    %v782 = vpop.permute.xlu0 %781
    %783 = vrot.lane.b32.xlu0 %v191, 32
    %v784 = vpop.permute.xlu0 %783
    %785 = vrot.lane.b32.xlu0 %v199, 32
    %v786 = vpop.permute.xlu0 %785
    %787 = vrot.lane.b32.xlu0 %v207, 32
    %v788 = vpop.permute.xlu0 %787
    %797 = vrot.lane.b32.xlu0 %v152, 64
    %v798 = vpop.permute.xlu0 %797
    %799 = vrot.lane.b32.xlu0 %v160, 64
    %v800 = vpop.permute.xlu0 %799
    %801 = vrot.lane.b32.xlu0 %v168, 64
    %v802 = vpop.permute.xlu0 %801
    %803 = vrot.lane.b32.xlu0 %v176, 64
    %v804 = vpop.permute.xlu0 %803
    %805 = vrot.lane.b32.xlu0 %v184, 64
    %v806 = vpop.permute.xlu0 %805
    %807 = vrot.lane.b32.xlu0 %v192, 64
    %v808 = vpop.permute.xlu0 %807
    %809 = vrot.lane.b32.xlu0 %v200, 64
    %v810 = vpop.permute.xlu0 %809
    %811 = vrot.lane.b32.xlu0 %v208, 64
    %v812 = vpop.permute.xlu0 %811
    %829 = vrot.lane.b32.xlu0 %v153, 96
    %v830 = vpop.permute.xlu0 %829
    %831 = vrot.lane.b32.xlu0 %v161, 96
    %v832 = vpop.permute.xlu0 %831
    %833 = vrot.lane.b32.xlu0 %v169, 96
    %v834 = vpop.permute.xlu0 %833
    %835 = vrot.lane.b32.xlu0 %v177, 96
    %v836 = vpop.permute.xlu0 %835
    %837 = vrot.lane.b32.xlu0 %v185, 96
    %v838 = vpop.permute.xlu0 %837
    %839 = vrot.lane.b32.xlu0 %v193, 96
    %v840 = vpop.permute.xlu0 %839
    %841 = vrot.lane.b32.xlu0 %v201, 96
    %v842 = vpop.permute.xlu0 %841
    %843 = vrot.lane.b32.xlu0 %v209, 96
    %v844 = vpop.permute.xlu0 %843
    %v853 = vsel %vm329, %v150, %v774
    %v854 = vsel %vm329, %v158, %v776
    %v855 = vsel %vm329, %v166, %v778
    %v856 = vsel %vm329, %v174, %v780
    %v857 = vsel %vm329, %v182, %v782
    %v858 = vsel %vm329, %v190, %v784
    %v859 = vsel %vm329, %v198, %v786
    %v860 = vsel %vm329, %v206, %v788
    %v861 = vsel %vm338, %v853, %v798
    %v862 = vsel %vm338, %v854, %v800
    %v863 = vsel %vm338, %v855, %v802
    %v864 = vsel %vm338, %v856, %v804
    %v865 = vsel %vm338, %v857, %v806
    %v866 = vsel %vm338, %v858, %v808
    %v867 = vsel %vm338, %v859, %v810
    %v868 = vsel %vm338, %v860, %v812
    %v869 = vsel %vm347, %v861, %v830
    %v870 = vsel %vm347, %v862, %v832
    %v871 = vsel %vm347, %v863, %v834
    %v872 = vsel %vm347, %v864, %v836
    %v873 = vsel %vm347, %v865, %v838
    %v874 = vsel %vm347, %v866, %v840
    %v875 = vsel %vm347, %v867, %v842
    %v876 = vsel %vm347, %v868, %v844
    %v877 = vpack.c.bf16 %v870, %v869
    %v878 = vpack.c.bf16 %v162, %v154
    %v879 = vpack.c.bf16 %v872, %v871
    %v880 = vpack.c.bf16 %v178, %v170
    %v881 = vpack.c.bf16 %v874, %v873
    %v882 = vpack.c.bf16 %v194, %v186
    %v883 = vpack.c.bf16 %v876, %v875
    %v884 = vpack.c.bf16 %v210, %v202
    %v886 = vsel %vm329, %v878, 0
    %v889 = vsel %vm329, %v880, 0
    %v892 = vsel %vm329, %v882, 0
    %v895 = vsel %vm329, %v884, 0
    %897 = vmatprep.subr.bf16.mxu0 %v436
    %898 = vmatpush1.bf16.msra.mxu0 %v435
    %899 = vmatprep.subr.bf16.mxu0 %v438
    %900 = vmatpush1.bf16.msra.mxu0 %v437
    %901 = vmatprep.subr.bf16.mxu0 %v440
    %902 = vmatpush1.bf16.msra.mxu0 %v439
    %903 = vmatprep.subr.bf16.mxu0 %v442
    %904 = vmatpush1.bf16.msra.mxu0 %v441
    %905 = vmatprep.subr.bf16.mxu0 %v444
    %906 = vmatpush1.bf16.msra.mxu0 %v443
    %907 = vmatprep.subr.bf16.mxu0 %v446
    %908 = vmatpush1.bf16.msra.mxu0 %v445
    %909 = vmatprep.subr.bf16.mxu0 %v448
    %910 = vmatpush1.bf16.msra.mxu0 %v447
    %911 = vmatprep.subr.bf16.mxu0 %v450
    %912 = vmatpush1.bf16.msra.mxu0 %v449
    %913 = vmatprep.subr.bf16.mxu0 %v452
    %914 = vmatpush1.bf16.msra.mxu0 %v451
    %915 = vmatprep.subr.bf16.mxu0 %v454
    %916 = vmatpush1.bf16.msra.mxu0 %v453
    %917 = vmatprep.subr.bf16.mxu0 0
    %918 = vmatpush1.bf16.msra.mxu0 0
    %919 = vmatprep.subr.bf16.mxu0 0
    %920 = vmatpush1.bf16.msra.mxu0 0
    %921 = vmatprep.subr.bf16.mxu0 0
    %922 = vmatpush1.bf16.msra.mxu0 0
    %923 = vmatprep.subr.bf16.mxu0 0
    %924 = vmatpush1.bf16.msra.mxu0 0
    %925 = vmatprep.subr.bf16.mxu0 0
    %926 = vmatpush1.bf16.msra.mxu0 0
    %927 = vmatprep.subr.bf16.mxu0 0
    %928 = vmatpush1.bf16.msra.mxu0 0
    %929 = vmatprep.mubr.bf16.mxu0 %v886
    %930 = vmatmul.mubr.bf16.gmra.mrb[0].mxu0 %v877
    %v931 = vpop.f32.mrb[0].mxu0
    %v932 = vadd.f32 %v368, %v931
    %v933 = vpop.f32.mrb[0].mxu0
    %v934 = vadd.f32 %v372, %v933
    %v935 = vpop.f32.mrb[0].mxu0
    %v936 = vadd.f32 %v368, %v935
    %v937 = vpop.f32.mrb[0].mxu0
    %v938 = vadd.f32 %v372, %v937
    %939 = vmatprep.mubr.bf16.mxu0 %v889
    %940 = vmatmul.mubr.bf16.gmra.mrb[0].mxu0 %v879
    %v941 = vpop.f32.mrb[0].mxu0
    %v942 = vadd.f32 %v368, %v941
    %v943 = vpop.f32.mrb[0].mxu0
    %v944 = vadd.f32 %v372, %v943
    %v945 = vpop.f32.mrb[0].mxu0
    %v946 = vadd.f32 %v368, %v945
    %v947 = vpop.f32.mrb[0].mxu0
    %v948 = vadd.f32 %v372, %v947
    %949 = vmatprep.mubr.bf16.mxu0 %v892
    %950 = vmatmul.mubr.bf16.gmra.mrb[0].mxu0 %v881
    %v951 = vpop.f32.mrb[0].mxu0
    %v952 = vadd.f32 %v368, %v951
    %v953 = vpop.f32.mrb[0].mxu0
    %v954 = vadd.f32 %v372, %v953
    %v955 = vpop.f32.mrb[0].mxu0
    %v956 = vadd.f32 %v368, %v955
    %v957 = vpop.f32.mrb[0].mxu0
    %v958 = vadd.f32 %v372, %v957
    %959 = vmatprep.mubr.bf16.mxu0 %v895
    %960 = vmatmul.mubr.bf16.gmra.mrb[0].mxu0 %v883
    %v961 = vpop.f32.mrb[0].mxu0
    %v962 = vadd.f32 %v368, %v961
    %v963 = vpop.f32.mrb[0].mxu0
    %v964 = vadd.f32 %v372, %v963
    %v965 = vpop.f32.mrb[0].mxu0
    %v966 = vadd.f32 %v368, %v965
    %v967 = vpop.f32.mrb[0].mxu0
    %v968 = vadd.f32 %v372, %v967
    %969 = vdwg.mxu0
    %v970 = vmax.f32 %v932, %v934
    %v971 = vmax.f32 %v936, %v938
    %v972 = vmax.f32 %v942, %v944
    %v973 = vmax.f32 %v946, %v948
    %v974 = vmax.f32 %v952, %v954
    %v975 = vmax.f32 %v956, %v958
    %v976 = vmax.f32 %v962, %v964
    %v977 = vmax.f32 %v966, %v968
    %978 = vrot.lane.b32.xlu0 %v152, 32
    %v979 = vpop.permute.xlu0 %978
    %980 = vrot.lane.b32.xlu0 %v160, 32
    %v981 = vpop.permute.xlu0 %980
    %982 = vrot.lane.b32.xlu0 %v168, 32
    %v983 = vpop.permute.xlu0 %982
    %984 = vrot.lane.b32.xlu0 %v176, 32
    %v985 = vpop.permute.xlu0 %984
    %986 = vrot.lane.b32.xlu0 %v184, 32
    %v987 = vpop.permute.xlu0 %986
    %988 = vrot.lane.b32.xlu0 %v192, 32
    %v989 = vpop.permute.xlu0 %988
    %990 = vrot.lane.b32.xlu0 %v200, 32
    %v991 = vpop.permute.xlu0 %990
    %992 = vrot.lane.b32.xlu0 %v208, 32
    %v993 = vpop.permute.xlu0 %992
    %1002 = vrot.lane.b32.xlu0 %v153, 64
    %v1003 = vpop.permute.xlu0 %1002
    %1004 = vrot.lane.b32.xlu0 %v161, 64
    %v1005 = vpop.permute.xlu0 %1004
    %1006 = vrot.lane.b32.xlu0 %v169, 64
    %v1007 = vpop.permute.xlu0 %1006
    %1008 = vrot.lane.b32.xlu0 %v177, 64
    %v1009 = vpop.permute.xlu0 %1008
    %1010 = vrot.lane.b32.xlu0 %v185, 64
    %v1011 = vpop.permute.xlu0 %1010
    %1012 = vrot.lane.b32.xlu0 %v193, 64
    %v1013 = vpop.permute.xlu0 %1012
    %1014 = vrot.lane.b32.xlu0 %v201, 64
    %v1015 = vpop.permute.xlu0 %1014
    %1016 = vrot.lane.b32.xlu0 %v209, 64
    %v1017 = vpop.permute.xlu0 %1016
    %1034 = vrot.lane.b32.xlu0 %v154, 96
    %v1035 = vpop.permute.xlu0 %1034
    %1036 = vrot.lane.b32.xlu0 %v162, 96
    %v1037 = vpop.permute.xlu0 %1036
    %1038 = vrot.lane.b32.xlu0 %v170, 96
    %v1039 = vpop.permute.xlu0 %1038
    %1040 = vrot.lane.b32.xlu0 %v178, 96
    %v1041 = vpop.permute.xlu0 %1040
    %1042 = vrot.lane.b32.xlu0 %v186, 96
    %v1043 = vpop.permute.xlu0 %1042
    %1044 = vrot.lane.b32.xlu0 %v194, 96
    %v1045 = vpop.permute.xlu0 %1044
    %1046 = vrot.lane.b32.xlu0 %v202, 96
    %v1047 = vpop.permute.xlu0 %1046
    %1048 = vrot.lane.b32.xlu0 %v210, 96
    %v1049 = vpop.permute.xlu0 %1048
    %v1058 = vsel %vm329, %v151, %v979
    %v1059 = vsel %vm329, %v159, %v981
    %v1060 = vsel %vm329, %v167, %v983
    %v1061 = vsel %vm329, %v175, %v985
    %v1062 = vsel %vm329, %v183, %v987
    %v1063 = vsel %vm329, %v191, %v989
    %v1064 = vsel %vm329, %v199, %v991
    %v1065 = vsel %vm329, %v207, %v993
    %v1066 = vsel %vm338, %v1058, %v1003
    %v1067 = vsel %vm338, %v1059, %v1005
    %v1068 = vsel %vm338, %v1060, %v1007
    %v1069 = vsel %vm338, %v1061, %v1009
    %v1070 = vsel %vm338, %v1062, %v1011
    %v1071 = vsel %vm338, %v1063, %v1013
    %v1072 = vsel %vm338, %v1064, %v1015
    %v1073 = vsel %vm338, %v1065, %v1017
    %v1074 = vsel %vm347, %v1066, %v1035
    %v1075 = vsel %vm347, %v1067, %v1037
    %v1076 = vsel %vm347, %v1068, %v1039
    %v1077 = vsel %vm347, %v1069, %v1041
    %v1078 = vsel %vm347, %v1070, %v1043
    %v1079 = vsel %vm347, %v1071, %v1045
    %v1080 = vsel %vm347, %v1072, %v1047
    %v1081 = vsel %vm347, %v1073, %v1049
    %v1082 = vpack.c.bf16 %v1075, %v1074
    %v1083 = vpack.c.bf16 %v163, %v155
    %v1084 = vpack.c.bf16 %v1077, %v1076
    %v1085 = vpack.c.bf16 %v179, %v171
    %v1086 = vpack.c.bf16 %v1079, %v1078
    %v1087 = vpack.c.bf16 %v195, %v187
    %v1088 = vpack.c.bf16 %v1081, %v1080
    %v1089 = vpack.c.bf16 %v211, %v203
    %v1091 = vsel %vm329, %v1083, 0
    %v1094 = vsel %vm329, %v1085, 0
    %v1097 = vsel %vm329, %v1087, 0
    %v1100 = vsel %vm329, %v1089, 0
    %1102 = vmatprep.subr.bf16.mxu0 %v436
    %1103 = vmatpush1.bf16.msra.mxu0 %v435
    %1104 = vmatprep.subr.bf16.mxu0 %v438
    %1105 = vmatpush1.bf16.msra.mxu0 %v437
    %1106 = vmatprep.subr.bf16.mxu0 %v440
    %1107 = vmatpush1.bf16.msra.mxu0 %v439
    %1108 = vmatprep.subr.bf16.mxu0 %v442
    %1109 = vmatpush1.bf16.msra.mxu0 %v441
    %1110 = vmatprep.subr.bf16.mxu0 %v444
    %1111 = vmatpush1.bf16.msra.mxu0 %v443
    %1112 = vmatprep.subr.bf16.mxu0 %v446
    %1113 = vmatpush1.bf16.msra.mxu0 %v445
    %1114 = vmatprep.subr.bf16.mxu0 %v448
    %1115 = vmatpush1.bf16.msra.mxu0 %v447
    %1116 = vmatprep.subr.bf16.mxu0 %v450
    %1117 = vmatpush1.bf16.msra.mxu0 %v449
    %1118 = vmatprep.subr.bf16.mxu0 %v452
    %1119 = vmatpush1.bf16.msra.mxu0 %v451
    %1120 = vmatprep.subr.bf16.mxu0 %v454
    %1121 = vmatpush1.bf16.msra.mxu0 %v453
    %1122 = vmatprep.subr.bf16.mxu0 0
    %1123 = vmatpush1.bf16.msra.mxu0 0
    %1124 = vmatprep.subr.bf16.mxu0 0
    %1125 = vmatpush1.bf16.msra.mxu0 0
    %1126 = vmatprep.subr.bf16.mxu0 0
    %1127 = vmatpush1.bf16.msra.mxu0 0
    %1128 = vmatprep.subr.bf16.mxu0 0
    %1129 = vmatpush1.bf16.msra.mxu0 0
    %1130 = vmatprep.subr.bf16.mxu0 0
    %1131 = vmatpush1.bf16.msra.mxu0 0
    %1132 = vmatprep.subr.bf16.mxu0 0
    %1133 = vmatpush1.bf16.msra.mxu0 0
    %1134 = vmatprep.mubr.bf16.mxu0 %v1091
    %1135 = vmatmul.mubr.bf16.gmra.mrb[0].mxu0 %v1082
    %v1136 = vpop.f32.mrb[0].mxu0
    %v1137 = vadd.f32 %v368, %v1136
    %v1138 = vpop.f32.mrb[0].mxu0
    %v1139 = vadd.f32 %v372, %v1138
    %v1140 = vpop.f32.mrb[0].mxu0
    %v1141 = vadd.f32 %v368, %v1140
    %v1142 = vpop.f32.mrb[0].mxu0
    %v1143 = vadd.f32 %v372, %v1142
    %1144 = vmatprep.mubr.bf16.mxu0 %v1094
    %1145 = vmatmul.mubr.bf16.gmra.mrb[0].mxu0 %v1084
    %v1146 = vpop.f32.mrb[0].mxu0
    %v1147 = vadd.f32 %v368, %v1146
    %v1148 = vpop.f32.mrb[0].mxu0
    %v1149 = vadd.f32 %v372, %v1148
    %v1150 = vpop.f32.mrb[0].mxu0
    %v1151 = vadd.f32 %v368, %v1150
    %v1152 = vpop.f32.mrb[0].mxu0
    %v1153 = vadd.f32 %v372, %v1152
    %1154 = vmatprep.mubr.bf16.mxu0 %v1097
    %1155 = vmatmul.mubr.bf16.gmra.mrb[0].mxu0 %v1086
    %v1156 = vpop.f32.mrb[0].mxu0
    %v1157 = vadd.f32 %v368, %v1156
    %v1158 = vpop.f32.mrb[0].mxu0
    %v1159 = vadd.f32 %v372, %v1158
    %v1160 = vpop.f32.mrb[0].mxu0
    %v1161 = vadd.f32 %v368, %v1160
    %v1162 = vpop.f32.mrb[0].mxu0
    %v1163 = vadd.f32 %v372, %v1162
    %1164 = vmatprep.mubr.bf16.mxu0 %v1100
    %1165 = vmatmul.mubr.bf16.gmra.mrb[0].mxu0 %v1088
    %v1166 = vpop.f32.mrb[0].mxu0
    %v1167 = vadd.f32 %v368, %v1166
    %v1168 = vpop.f32.mrb[0].mxu0
    %v1169 = vadd.f32 %v372, %v1168
    %v1170 = vpop.f32.mrb[0].mxu0
    %v1171 = vadd.f32 %v368, %v1170
    %v1172 = vpop.f32.mrb[0].mxu0
    %v1173 = vadd.f32 %v372, %v1172
    %1174 = vdwg.mxu0
    %v1175 = vmax.f32 %v1137, %v1139
    %v1176 = vmax.f32 %v1141, %v1143
    %v1177 = vmax.f32 %v1147, %v1149
    %v1178 = vmax.f32 %v1151, %v1153
    %v1179 = vmax.f32 %v1157, %v1159
    %v1180 = vmax.f32 %v1161, %v1163
    %v1181 = vmax.f32 %v1167, %v1169
    %v1182 = vmax.f32 %v1171, %v1173
    %v1183 = vmax.f32 %v560, %v765
    %v1184 = vmax.f32 %v561, %v766
    %v1185 = vmax.f32 %v562, %v767
    %v1186 = vmax.f32 %v563, %v768
    %v1187 = vmax.f32 %v564, %v769
    %v1188 = vmax.f32 %v565, %v770
    %v1189 = vmax.f32 %v566, %v771
    %v1190 = vmax.f32 %v567, %v772
    %v1191 = vmax.f32 %v1183, 0.0
    %v1192 = vmax.f32 %v1184, 0.0
    %v1193 = vmax.f32 %v1185, 0.0
    %v1194 = vmax.f32 %v1186, 0.0
    %v1195 = vmax.f32 %v1187, 0.0
    %v1196 = vmax.f32 %v1188, 0.0
    %v1197 = vmax.f32 %v1189, 0.0
    %v1198 = vmax.f32 %v1190, 0.0
    %v1199 = vmax.f32 %v970, %v1175
    %v1200 = vmax.f32 %v971, %v1176
    %v1201 = vmax.f32 %v972, %v1177
    %v1202 = vmax.f32 %v973, %v1178
    %v1203 = vmax.f32 %v974, %v1179
    %v1204 = vmax.f32 %v975, %v1180
    %v1205 = vmax.f32 %v976, %v1181
    %v1206 = vmax.f32 %v977, %v1182
    %v1207 = vmax.f32 %v1199, 0.0
    %v1208 = vmax.f32 %v1200, 0.0
    %v1209 = vmax.f32 %v1201, 0.0
    %v1210 = vmax.f32 %v1202, 0.0
    %v1211 = vmax.f32 %v1203, 0.0
    %v1212 = vmax.f32 %v1204, 0.0
    %v1213 = vmax.f32 %v1205, 0.0
    %v1214 = vmax.f32 %v1206, 0.0
    %v1215 = vld [vmem:[#allocation8] sm:$0xff]
    %v1216 = vld [vmem:[#allocation8 + $0x8] sm:$0xff]
    %v1217 = vld [vmem:[#allocation8 + $0x10] sm:$0xff]
    %v1218 = vld [vmem:[#allocation8 + $0x18] sm:$0xff]
    %v1219 = vld [vmem:[#allocation8 + $0x20] sm:$0xff]
    %v1220 = vld [vmem:[#allocation8 + $0x28] sm:$0xff]
    %v1221 = vld [vmem:[#allocation8 + $0x30] sm:$0xff]
    %v1222 = vld [vmem:[#allocation8 + $0x38] sm:$0xff]
    %v1223 = vld [vmem:[#allocation8 + $0x40] sm:$0xff]
    %v1224 = vld [vmem:[#allocation8 + $0x48] sm:$0xff]
    %v1225 = vld [vmem:[#allocation8 + $0x50] sm:$0xff]
    %v1226 = vld [vmem:[#allocation8 + $0x58] sm:$0xff]
    %v1227 = vld [vmem:[#allocation8 + $0x60] sm:$0xff]
    %v1228 = vld [vmem:[#allocation8 + $0x68] sm:$0xff]
    %v1229 = vld [vmem:[#allocation8 + $0x70] sm:$0xff]
    %v1230 = vld [vmem:[#allocation8 + $0x78] sm:$0xff]
    %v1231 = vld [vmem:[#allocation8 + $0x80] sm:$0xff]
    %v1232 = vld [vmem:[#allocation8 + $0x88] sm:$0xff]
    %v1233 = vld [vmem:[#allocation8 + $0x90] sm:$0xff]
    %v1234 = vld [vmem:[#allocation8 + $0x98] sm:$0xff]
    %v1235 = vld [vmem:[#allocation8 + $0xa0] sm:$0xff]
    %v1236 = vld [vmem:[#allocation8 + $0xa8] sm:$0xff]
    %v1237 = vld [vmem:[#allocation8 + $0xb0] sm:$0xff]
    %v1238 = vld [vmem:[#allocation8 + $0xb8] sm:$0xff]
    %v1239 = vld [vmem:[#allocation8 + $0xc0] sm:$0xff]
    %v1240 = vld [vmem:[#allocation8 + $0xc8] sm:$0xff]
    %v1241 = vld [vmem:[#allocation8 + $0xd0] sm:$0xff]
    %v1242 = vld [vmem:[#allocation8 + $0xd8] sm:$0xff]
    %v1243 = vld [vmem:[#allocation8 + $0xe0] sm:$0xff]
    %v1244 = vld [vmem:[#allocation8 + $0xe8] sm:$0xff]
    %v1245 = vld [vmem:[#allocation8 + $0xf0] sm:$0xff]
    %v1246 = vld [vmem:[#allocation8 + $0xf8] sm:$0xff]
    %v1247 = vld [vmem:[#allocation8 + $0x100] sm:$0xff]
    %v1248 = vld [vmem:[#allocation8 + $0x108] sm:$0xff]
    %v1249 = vld [vmem:[#allocation8 + $0x110] sm:$0xff]
    %v1250 = vld [vmem:[#allocation8 + $0x118] sm:$0xff]
    %v1251 = vld [vmem:[#allocation8 + $0x120] sm:$0xff]
    %v1252 = vld [vmem:[#allocation8 + $0x128] sm:$0xff]
    %v1253 = vld [vmem:[#allocation8 + $0x130] sm:$0xff]
    %v1254 = vld [vmem:[#allocation8 + $0x138] sm:$0xff]
    %v1255 = vld [vmem:[#allocation8 + $0x140] sm:$0xff]
    %v1256 = vld [vmem:[#allocation8 + $0x148] sm:$0xff]
    %v1257 = vld [vmem:[#allocation8 + $0x150] sm:$0xff]
    %v1258 = vld [vmem:[#allocation8 + $0x158] sm:$0xff]
    %v1259 = vld [vmem:[#allocation8 + $0x160] sm:$0xff]
    %v1260 = vld [vmem:[#allocation8 + $0x168] sm:$0xff]
    %v1261 = vld [vmem:[#allocation8 + $0x170] sm:$0xff]
    %v1262 = vld [vmem:[#allocation8 + $0x178] sm:$0xff]
    %v1263 = vld [vmem:[#allocation8 + $0x180] sm:$0xff]
    %v1264 = vld [vmem:[#allocation8 + $0x188] sm:$0xff]
    %v1265 = vld [vmem:[#allocation8 + $0x190] sm:$0xff]
    %v1266 = vld [vmem:[#allocation8 + $0x198] sm:$0xff]
    %v1267 = vld [vmem:[#allocation8 + $0x1a0] sm:$0xff]
    %v1268 = vld [vmem:[#allocation8 + $0x1a8] sm:$0xff]
    %v1269 = vld [vmem:[#allocation8 + $0x1b0] sm:$0xff]
    %v1270 = vld [vmem:[#allocation8 + $0x1b8] sm:$0xff]
    %v1271 = vld [vmem:[#allocation8 + $0x1c0] sm:$0xff]
    %v1272 = vld [vmem:[#allocation8 + $0x1c8] sm:$0xff]
    %v1273 = vld [vmem:[#allocation8 + $0x1d0] sm:$0xff]
    %v1274 = vld [vmem:[#allocation8 + $0x1d8] sm:$0xff]
    %v1275 = vld [vmem:[#allocation8 + $0x1e0] sm:$0xff]
    %v1276 = vld [vmem:[#allocation8 + $0x1e8] sm:$0xff]
    %v1277 = vld [vmem:[#allocation8 + $0x1f0] sm:$0xff]
    %v1278 = vld [vmem:[#allocation8 + $0x1f8] sm:$0xff]
    %v1279 = vld [vmem:[#allocation8 + $0x200] sm:$0xff]
    %v1280 = vld [vmem:[#allocation8 + $0x208] sm:$0xff]
    %v1281 = vld [vmem:[#allocation8 + $0x210] sm:$0xff]
    %v1282 = vld [vmem:[#allocation8 + $0x218] sm:$0xff]
    %v1283 = vld [vmem:[#allocation8 + $0x220] sm:$0xff]
    %v1284 = vld [vmem:[#allocation8 + $0x228] sm:$0xff]
    %v1285 = vld [vmem:[#allocation8 + $0x230] sm:$0xff]
    %v1286 = vld [vmem:[#allocation8 + $0x238] sm:$0xff]
    %v1287 = vld [vmem:[#allocation8 + $0x240] sm:$0xff]
    %v1288 = vld [vmem:[#allocation8 + $0x248] sm:$0xff]
    %v1289 = vld [vmem:[#allocation8 + $0x250] sm:$0xff]
    %v1290 = vld [vmem:[#allocation8 + $0x258] sm:$0xff]
    %v1291 = vld [vmem:[#allocation8 + $0x260] sm:$0xff]
    %v1292 = vld [vmem:[#allocation8 + $0x268] sm:$0xff]
    %v1293 = vld [vmem:[#allocation8 + $0x270] sm:$0xff]
    %v1294 = vld [vmem:[#allocation8 + $0x278] sm:$0xff]
    %v1295 = vld [vmem:[#allocation10] sm:$0x3]
    %v1304 = vrot.slane %v1191, 1
    %v1305 = vrot.slane %v1192, 1
    %v1306 = vrot.slane %v1193, 1
    %v1307 = vrot.slane %v1194, 1
    %v1308 = vrot.slane %v1195, 1
    %v1309 = vrot.slane %v1196, 1
    %v1310 = vrot.slane %v1197, 1
    %v1311 = vrot.slane %v1198, 1
    %v1320 = vrot.slane %v1207, 1
    %v1321 = vrot.slane %v1208, 1
    %v1322 = vrot.slane %v1209, 1
    %v1323 = vrot.slane %v1210, 1
    %v1324 = vrot.slane %v1211, 1
    %v1325 = vrot.slane %v1212, 1
    %v1326 = vrot.slane %v1213, 1
    %v1327 = vrot.slane %v1214, 1
    %v1328 = vrot.slane %v1191, 2
    %v1329 = vrot.slane %v1192, 2
    %v1330 = vrot.slane %v1193, 2
    %v1331 = vrot.slane %v1194, 2
    %v1332 = vrot.slane %v1195, 2
    %v1333 = vrot.slane %v1196, 2
    %v1334 = vrot.slane %v1197, 2
    %v1335 = vrot.slane %v1198, 2
    %v1336 = vcombine.low %v1191, %v1207
    %v1337 = vcombine.low %v1304, %v1320
    %v1338 = vcombine.low %v1192, %v1208
    %v1339 = vcombine.low %v1305, %v1321
    %v1340 = vcombine.low %v1193, %v1209
    %v1341 = vcombine.low %v1306, %v1322
    %v1342 = vcombine.low %v1194, %v1210
    %v1343 = vcombine.low %v1307, %v1323
    %v1344 = vcombine.low %v1195, %v1211
    %v1345 = vcombine.low %v1308, %v1324
    %v1346 = vcombine.low %v1196, %v1212
    %v1347 = vcombine.low %v1309, %v1325
    %v1348 = vcombine.low %v1197, %v1213
    %v1349 = vcombine.low %v1310, %v1326
    %v1350 = vcombine.low %v1198, %v1214
    %v1351 = vcombine.low %v1311, %v1327
    %v1352 = vcombine.low %v1336, %v1338
    %v1353 = vcombine.high %v1336, %v1338
    %v1354 = vcombine.low %v1337, %v1339
    %v1355 = vcombine.high %v1337, %v1339
    %v1356 = vcombine.low %v1328, %v1329
    %v1357 = vcombine.low %v1340, %v1342
    %v1358 = vcombine.high %v1340, %v1342
    %v1359 = vcombine.low %v1341, %v1343
    %v1360 = vcombine.high %v1341, %v1343
    %v1361 = vcombine.low %v1330, %v1331
    %v1362 = vcombine.low %v1344, %v1346
    %v1363 = vcombine.high %v1344, %v1346
    %v1364 = vcombine.low %v1345, %v1347
    %v1365 = vcombine.high %v1345, %v1347
    %v1366 = vcombine.low %v1332, %v1333
    %v1367 = vcombine.low %v1348, %v1350
    %v1368 = vcombine.high %v1348, %v1350
    %v1369 = vcombine.low %v1349, %v1351
    %v1370 = vcombine.high %v1349, %v1351
    %v1371 = vcombine.low %v1334, %v1335
    %v1392 = vpack.c.bf16 %v1357, %v1352
    %v1393 = vpack.c.bf16 %v1358, %v1353
    %v1394 = vpack.c.bf16 %v1359, %v1354
    %v1395 = vpack.c.bf16 %v1360, %v1355
    %v1396 = vpack.c.bf16 %v1361, %v1356
    %v1397 = vpack.c.bf16 %v1367, %v1362
    %v1398 = vpack.c.bf16 %v1368, %v1363
    %v1399 = vpack.c.bf16 %v1369, %v1364
    %v1400 = vpack.c.bf16 %v1370, %v1365
    %v1401 = vpack.c.bf16 %v1371, %v1366
    %v1403 = vlaneseq
    %v1404 = vshrl.u32 %v1403, 7
    %v1405 = vsub.s32 0, %v1404
    %v1406 = vrot.slane %v1295, %v1405
    %v1407 = vlaneseq
    %v1408 = vshrl.u32 %v1407, 7
    %v1409 = vsub.s32 1, %v1408
    %v1410 = vrot.slane %v1295, %v1409
    %v1493 = vunpack.c.l.b16 %v1215
    %v1494 = vunpack.c.h.b16 %v1215
    %v1495 = vunpack.c.l.b16 %v1216
    %v1496 = vunpack.c.h.b16 %v1216
    %v1497 = vunpack.c.l.b16 %v1217
    %v1498 = vunpack.c.h.b16 %v1217
    %v1499 = vunpack.c.l.b16 %v1218
    %v1500 = vunpack.c.h.b16 %v1218
    %v1501 = vunpack.c.l.b16 %v1219
    %v1502 = vunpack.c.h.b16 %v1219
    %v1503 = vunpack.c.l.b16 %v1220
    %v1504 = vunpack.c.h.b16 %v1220
    %v1505 = vunpack.c.l.b16 %v1221
    %v1506 = vunpack.c.h.b16 %v1221
    %v1507 = vunpack.c.l.b16 %v1222
    %v1508 = vunpack.c.h.b16 %v1222
    %v1509 = vunpack.c.l.b16 %v1223
    %v1510 = vunpack.c.h.b16 %v1223
    %v1511 = vunpack.c.l.b16 %v1224
    %v1512 = vunpack.c.h.b16 %v1224
    %v1513 = vunpack.c.l.b16 %v1225
    %v1514 = vunpack.c.h.b16 %v1225
    %v1515 = vunpack.c.l.b16 %v1226
    %v1516 = vunpack.c.h.b16 %v1226
    %v1517 = vunpack.c.l.b16 %v1227
    %v1518 = vunpack.c.h.b16 %v1227
    %v1519 = vunpack.c.l.b16 %v1228
    %v1520 = vunpack.c.h.b16 %v1228
    %v1521 = vunpack.c.l.b16 %v1229
    %v1522 = vunpack.c.h.b16 %v1229
    %v1523 = vunpack.c.l.b16 %v1230
    %v1524 = vunpack.c.h.b16 %v1230
    %v1525 = vunpack.c.l.b16 %v1231
    %v1526 = vunpack.c.h.b16 %v1231
    %v1527 = vunpack.c.l.b16 %v1232
    %v1528 = vunpack.c.h.b16 %v1232
    %v1529 = vunpack.c.l.b16 %v1233
    %v1530 = vunpack.c.h.b16 %v1233
    %v1531 = vunpack.c.l.b16 %v1234
    %v1532 = vunpack.c.h.b16 %v1234
    %v1533 = vunpack.c.l.b16 %v1235
    %v1534 = vunpack.c.h.b16 %v1235
    %v1535 = vunpack.c.l.b16 %v1236
    %v1536 = vunpack.c.h.b16 %v1236
    %v1537 = vunpack.c.l.b16 %v1237
    %v1538 = vunpack.c.h.b16 %v1237
    %v1539 = vunpack.c.l.b16 %v1238
    %v1540 = vunpack.c.h.b16 %v1238
    %v1541 = vunpack.c.l.b16 %v1239
    %v1542 = vunpack.c.h.b16 %v1239
    %v1543 = vunpack.c.l.b16 %v1240
    %v1544 = vunpack.c.h.b16 %v1240
    %v1545 = vunpack.c.l.b16 %v1241
    %v1546 = vunpack.c.h.b16 %v1241
    %v1547 = vunpack.c.l.b16 %v1242
    %v1548 = vunpack.c.h.b16 %v1242
    %v1549 = vunpack.c.l.b16 %v1243
    %v1550 = vunpack.c.h.b16 %v1243
    %v1551 = vunpack.c.l.b16 %v1244
    %v1552 = vunpack.c.h.b16 %v1244
    %v1553 = vunpack.c.l.b16 %v1245
    %v1554 = vunpack.c.h.b16 %v1245
    %v1555 = vunpack.c.l.b16 %v1246
    %v1556 = vunpack.c.h.b16 %v1246
    %v1557 = vunpack.c.l.b16 %v1247
    %v1558 = vunpack.c.h.b16 %v1247
    %v1559 = vunpack.c.l.b16 %v1248
    %v1560 = vunpack.c.h.b16 %v1248
    %v1561 = vunpack.c.l.b16 %v1249
    %v1562 = vunpack.c.h.b16 %v1249
    %v1563 = vunpack.c.l.b16 %v1250
    %v1564 = vunpack.c.h.b16 %v1250
    %v1565 = vunpack.c.l.b16 %v1251
    %v1566 = vunpack.c.h.b16 %v1251
    %v1567 = vunpack.c.l.b16 %v1252
    %v1568 = vunpack.c.h.b16 %v1252
    %v1569 = vunpack.c.l.b16 %v1253
    %v1570 = vunpack.c.h.b16 %v1253
    %v1571 = vunpack.c.l.b16 %v1254
    %v1572 = vunpack.c.h.b16 %v1254
    %v1573 = vunpack.c.l.b16 %v1255
    %v1574 = vunpack.c.h.b16 %v1255
    %v1575 = vunpack.c.l.b16 %v1256
    %v1576 = vunpack.c.h.b16 %v1256
    %v1577 = vunpack.c.l.b16 %v1257
    %v1578 = vunpack.c.h.b16 %v1257
    %v1579 = vunpack.c.l.b16 %v1258
    %v1580 = vunpack.c.h.b16 %v1258
    %v1581 = vunpack.c.l.b16 %v1259
    %v1582 = vunpack.c.h.b16 %v1259
    %v1583 = vunpack.c.l.b16 %v1260
    %v1584 = vunpack.c.h.b16 %v1260
    %v1585 = vunpack.c.l.b16 %v1261
    %v1586 = vunpack.c.h.b16 %v1261
    %v1587 = vunpack.c.l.b16 %v1262
    %v1588 = vunpack.c.h.b16 %v1262
    %v1589 = vunpack.c.l.b16 %v1263
    %v1590 = vunpack.c.h.b16 %v1263
    %v1591 = vunpack.c.l.b16 %v1264
    %v1592 = vunpack.c.h.b16 %v1264
    %v1593 = vunpack.c.l.b16 %v1265
    %v1594 = vunpack.c.h.b16 %v1265
    %v1595 = vunpack.c.l.b16 %v1266
    %v1596 = vunpack.c.h.b16 %v1266
    %v1597 = vunpack.c.l.b16 %v1267
    %v1598 = vunpack.c.h.b16 %v1267
    %v1599 = vunpack.c.l.b16 %v1268
    %v1600 = vunpack.c.h.b16 %v1268
    %v1601 = vunpack.c.l.b16 %v1269
    %v1602 = vunpack.c.h.b16 %v1269
    %v1603 = vunpack.c.l.b16 %v1270
    %v1604 = vunpack.c.h.b16 %v1270
    %v1605 = vunpack.c.l.b16 %v1271
    %v1606 = vunpack.c.h.b16 %v1271
    %v1607 = vunpack.c.l.b16 %v1272
    %v1608 = vunpack.c.h.b16 %v1272
    %v1609 = vunpack.c.l.b16 %v1273
    %v1610 = vunpack.c.h.b16 %v1273
    %v1611 = vunpack.c.l.b16 %v1274
    %v1612 = vunpack.c.h.b16 %v1274
    %v1613 = vunpack.c.l.b16 %v1275
    %v1614 = vunpack.c.h.b16 %v1275
    %v1615 = vunpack.c.l.b16 %v1276
    %v1616 = vunpack.c.h.b16 %v1276
    %v1617 = vunpack.c.l.b16 %v1277
    %v1618 = vunpack.c.h.b16 %v1277
    %v1619 = vunpack.c.l.b16 %v1278
    %v1620 = vunpack.c.h.b16 %v1278
    %v1621 = vunpack.c.l.b16 %v1279
    %v1622 = vunpack.c.h.b16 %v1279
    %v1623 = vunpack.c.l.b16 %v1280
    %v1624 = vunpack.c.h.b16 %v1280
    %v1625 = vunpack.c.l.b16 %v1281
    %v1626 = vunpack.c.h.b16 %v1281
    %v1627 = vunpack.c.l.b16 %v1282
    %v1628 = vunpack.c.h.b16 %v1282
    %v1629 = vunpack.c.l.b16 %v1283
    %v1630 = vunpack.c.h.b16 %v1283
    %v1631 = vunpack.c.l.b16 %v1284
    %v1632 = vunpack.c.h.b16 %v1284
    %v1633 = vunpack.c.l.b16 %v1285
    %v1634 = vunpack.c.h.b16 %v1285
    %v1635 = vunpack.c.l.b16 %v1286
    %v1636 = vunpack.c.h.b16 %v1286
    %v1637 = vunpack.c.l.b16 %v1287
    %v1638 = vunpack.c.h.b16 %v1287
    %v1639 = vunpack.c.l.b16 %v1288
    %v1640 = vunpack.c.h.b16 %v1288
    %v1641 = vunpack.c.l.b16 %v1289
    %v1642 = vunpack.c.h.b16 %v1289
    %v1643 = vunpack.c.l.b16 %v1290
    %v1644 = vunpack.c.h.b16 %v1290
    %v1645 = vunpack.c.l.b16 %v1291
    %v1646 = vunpack.c.h.b16 %v1291
    %v1647 = vunpack.c.l.b16 %v1292
    %v1648 = vunpack.c.h.b16 %v1292
    %v1649 = vunpack.c.l.b16 %v1293
    %v1650 = vunpack.c.h.b16 %v1293
    %v1651 = vunpack.c.l.b16 %v1294
    %v1652 = vunpack.c.h.b16 %v1294
    %v1653 = vpack.c.b16 %v1495, %v1493
    %v1654 = vpack.c.b16 %v1496, %v1494
    %v1655 = vpack.c.b16 %v1499, %v1497
    %v1656 = vpack.c.b16 %v1500, %v1498
    %v1657 = vpack.c.b16 %v1503, %v1501
    %v1658 = vpack.c.b16 %v1504, %v1502
    %v1659 = vpack.c.b16 %v1507, %v1505
    %v1660 = vpack.c.b16 %v1508, %v1506
    %v1661 = vpack.c.b16 %v1511, %v1509
    %v1662 = vpack.c.b16 %v1512, %v1510
    %v1663 = vpack.c.b16 %v1515, %v1513
    %v1664 = vpack.c.b16 %v1516, %v1514
    %v1665 = vpack.c.b16 %v1519, %v1517
    %v1666 = vpack.c.b16 %v1520, %v1518
    %v1667 = vpack.c.b16 %v1523, %v1521
    %v1668 = vpack.c.b16 %v1524, %v1522
    %v1669 = vpack.c.b16 %v1527, %v1525
    %v1670 = vpack.c.b16 %v1528, %v1526
    %v1671 = vpack.c.b16 %v1531, %v1529
    %v1672 = vpack.c.b16 %v1532, %v1530
    %v1673 = vpack.c.b16 %v1535, %v1533
    %v1674 = vpack.c.b16 %v1536, %v1534
    %v1675 = vpack.c.b16 %v1539, %v1537
    %v1676 = vpack.c.b16 %v1540, %v1538
    %v1677 = vpack.c.b16 %v1543, %v1541
    %v1678 = vpack.c.b16 %v1544, %v1542
    %v1679 = vpack.c.b16 %v1547, %v1545
    %v1680 = vpack.c.b16 %v1548, %v1546
    %v1681 = vpack.c.b16 %v1551, %v1549
    %v1682 = vpack.c.b16 %v1552, %v1550
    %v1683 = vpack.c.b16 %v1555, %v1553
    %v1684 = vpack.c.b16 %v1556, %v1554
    %v1685 = vpack.c.b16 %v1559, %v1557
    %v1686 = vpack.c.b16 %v1560, %v1558
    %v1687 = vpack.c.b16 %v1563, %v1561
    %v1688 = vpack.c.b16 %v1564, %v1562
    %v1689 = vpack.c.b16 %v1567, %v1565
    %v1690 = vpack.c.b16 %v1568, %v1566
    %v1691 = vpack.c.b16 %v1571, %v1569
    %v1692 = vpack.c.b16 %v1572, %v1570
    %v1693 = vpack.c.b16 %v1575, %v1573
    %v1694 = vpack.c.b16 %v1576, %v1574
    %v1695 = vpack.c.b16 %v1579, %v1577
    %v1696 = vpack.c.b16 %v1580, %v1578
    %v1697 = vpack.c.b16 %v1583, %v1581
    %v1698 = vpack.c.b16 %v1584, %v1582
    %v1699 = vpack.c.b16 %v1587, %v1585
    %v1700 = vpack.c.b16 %v1588, %v1586
    %v1701 = vpack.c.b16 %v1591, %v1589
    %v1702 = vpack.c.b16 %v1592, %v1590
    %v1703 = vpack.c.b16 %v1595, %v1593
    %v1704 = vpack.c.b16 %v1596, %v1594
    %v1705 = vpack.c.b16 %v1599, %v1597
    %v1706 = vpack.c.b16 %v1600, %v1598
    %v1707 = vpack.c.b16 %v1603, %v1601
    %v1708 = vpack.c.b16 %v1604, %v1602
    %v1709 = vpack.c.b16 %v1607, %v1605
    %v1710 = vpack.c.b16 %v1608, %v1606
    %v1711 = vpack.c.b16 %v1611, %v1609
    %v1712 = vpack.c.b16 %v1612, %v1610
    %v1713 = vpack.c.b16 %v1615, %v1613
    %v1714 = vpack.c.b16 %v1616, %v1614
    %v1715 = vpack.c.b16 %v1619, %v1617
    %v1716 = vpack.c.b16 %v1620, %v1618
    %v1717 = vpack.c.b16 %v1623, %v1621
    %v1718 = vpack.c.b16 %v1624, %v1622
    %v1719 = vpack.c.b16 %v1627, %v1625
    %v1720 = vpack.c.b16 %v1628, %v1626
    %v1721 = vpack.c.b16 %v1631, %v1629
    %v1722 = vpack.c.b16 %v1632, %v1630
    %v1723 = vpack.c.b16 %v1635, %v1633
    %v1724 = vpack.c.b16 %v1636, %v1634
    %v1725 = vpack.c.b16 %v1639, %v1637
    %v1726 = vpack.c.b16 %v1640, %v1638
    %v1727 = vpack.c.b16 %v1643, %v1641
    %v1728 = vpack.c.b16 %v1644, %v1642
    %v1729 = vpack.c.b16 %v1647, %v1645
    %v1730 = vpack.c.b16 %v1648, %v1646
    %v1731 = vpack.c.b16 %v1651, %v1649
    %v1732 = vpack.c.b16 %v1652, %v1650
    %1813 = vmatprep.subr.bf16.mxu0 %v1654
    %1814 = vmatpush1.bf16.msra.mxu0 %v1653
    %1815 = vmatprep.subr.bf16.mxu0 %v1656
    %1816 = vmatpush1.bf16.msra.mxu0 %v1655
    %1817 = vmatprep.subr.bf16.mxu0 %v1658
    %1818 = vmatpush1.bf16.msra.mxu0 %v1657
    %1819 = vmatprep.subr.bf16.mxu0 %v1660
    %1820 = vmatpush1.bf16.msra.mxu0 %v1659
    %1821 = vmatprep.subr.bf16.mxu0 %v1662
    %1822 = vmatpush1.bf16.msra.mxu0 %v1661
    %1823 = vmatprep.subr.bf16.mxu0 %v1664
    %1824 = vmatpush1.bf16.msra.mxu0 %v1663
    %1825 = vmatprep.subr.bf16.mxu0 %v1666
    %1826 = vmatpush1.bf16.msra.mxu0 %v1665
    %1827 = vmatprep.subr.bf16.mxu0 %v1668
    %1828 = vmatpush1.bf16.msra.mxu0 %v1667
    %1829 = vmatprep.subr.bf16.mxu0 %v1670
    %1830 = vmatpush1.bf16.msra.mxu0 %v1669
    %1831 = vmatprep.subr.bf16.mxu0 %v1672
    %1832 = vmatpush1.bf16.msra.mxu0 %v1671
    %1833 = vmatprep.subr.bf16.mxu0 %v1674
    %1834 = vmatpush1.bf16.msra.mxu0 %v1673
    %1835 = vmatprep.subr.bf16.mxu0 %v1676
    %1836 = vmatpush1.bf16.msra.mxu0 %v1675
    %1837 = vmatprep.subr.bf16.mxu0 %v1678
    %1838 = vmatpush1.bf16.msra.mxu0 %v1677
    %1839 = vmatprep.subr.bf16.mxu0 %v1680
    %1840 = vmatpush1.bf16.msra.mxu0 %v1679
    %1841 = vmatprep.subr.bf16.mxu0 %v1682
    %1842 = vmatpush1.bf16.msra.mxu0 %v1681
    %1843 = vmatprep.subr.bf16.mxu0 %v1684
    %1844 = vmatpush1.bf16.msra.mxu0 %v1683
    %1845 = vmatprep.mubr.bf16.mxu0 %v1393
    %1846 = vmatmul.mubr.bf16.gmra.mrb[0].mxu0 %v1392
    %v1847 = vpop.f32.mrb[0].mxu0
    %v1848 = vadd.f32 %v1406, %v1847
    %v1849 = vpop.f32.mrb[0].mxu0
    %v1850 = vadd.f32 %v1410, %v1849
    %v1851 = vpop.f32.mrb[0].mxu0
    %v1852 = vadd.f32 %v1406, %v1851
    %v1853 = vpop.f32.mrb[0].mxu0
    %v1854 = vadd.f32 %v1410, %v1853
    %1855 = vmatprep.mubr.bf16.mxu0 %v1398
    %1856 = vmatmul.mubr.bf16.gmra.mrb[0].mxu0 %v1397
    %v1857 = vpop.f32.mrb[0].mxu0
    %v1858 = vadd.f32 %v1406, %v1857
    %v1859 = vpop.f32.mrb[0].mxu0
    %v1860 = vadd.f32 %v1410, %v1859
    %v1861 = vpop.f32.mrb[0].mxu0
    %v1862 = vadd.f32 %v1406, %v1861
    %v1863 = vpop.f32.mrb[0].mxu0
    %v1864 = vadd.f32 %v1410, %v1863
    %1865 = vdwg.mxu0
    %1866 = vmatprep.subr.bf16.mxu0 %v1686
    %1867 = vmatpush1.bf16.msra.mxu0 %v1685
    %1868 = vmatprep.subr.bf16.mxu0 %v1688
    %1869 = vmatpush1.bf16.msra.mxu0 %v1687
    %1870 = vmatprep.subr.bf16.mxu0 %v1690
    %1871 = vmatpush1.bf16.msra.mxu0 %v1689
    %1872 = vmatprep.subr.bf16.mxu0 %v1692
    %1873 = vmatpush1.bf16.msra.mxu0 %v1691
    %1874 = vmatprep.subr.bf16.mxu0 %v1694
    %1875 = vmatpush1.bf16.msra.mxu0 %v1693
    %1876 = vmatprep.subr.bf16.mxu0 %v1696
    %1877 = vmatpush1.bf16.msra.mxu0 %v1695
    %1878 = vmatprep.subr.bf16.mxu0 %v1698
    %1879 = vmatpush1.bf16.msra.mxu0 %v1697
    %1880 = vmatprep.subr.bf16.mxu0 %v1700
    %1881 = vmatpush1.bf16.msra.mxu0 %v1699
    %1882 = vmatprep.subr.bf16.mxu0 %v1702
    %1883 = vmatpush1.bf16.msra.mxu0 %v1701
    %1884 = vmatprep.subr.bf16.mxu0 %v1704
    %1885 = vmatpush1.bf16.msra.mxu0 %v1703
    %1886 = vmatprep.subr.bf16.mxu0 %v1706
    %1887 = vmatpush1.bf16.msra.mxu0 %v1705
    %1888 = vmatprep.subr.bf16.mxu0 %v1708
    %1889 = vmatpush1.bf16.msra.mxu0 %v1707
    %1890 = vmatprep.subr.bf16.mxu0 %v1710
    %1891 = vmatpush1.bf16.msra.mxu0 %v1709
    %1892 = vmatprep.subr.bf16.mxu0 %v1712
    %1893 = vmatpush1.bf16.msra.mxu0 %v1711
    %1894 = vmatprep.subr.bf16.mxu0 %v1714
    %1895 = vmatpush1.bf16.msra.mxu0 %v1713
    %1896 = vmatprep.subr.bf16.mxu0 %v1716
    %1897 = vmatpush1.bf16.msra.mxu0 %v1715
    %1898 = vmatprep.mubr.bf16.mxu0 %v1395
    %1899 = vmatmul.mubr.bf16.gmra.mrb[0].mxu0 %v1394
    %v1900 = vpop.f32.mrb[0].mxu0
    %v1901 = vadd.f32 %v1848, %v1900
    %v1902 = vpop.f32.mrb[0].mxu0
    %v1903 = vadd.f32 %v1850, %v1902
    %v1904 = vpop.f32.mrb[0].mxu0
    %v1905 = vadd.f32 %v1852, %v1904
    %v1906 = vpop.f32.mrb[0].mxu0
    %v1907 = vadd.f32 %v1854, %v1906
    %1908 = vmatprep.mubr.bf16.mxu0 %v1400
    %1909 = vmatmul.mubr.bf16.gmra.mrb[0].mxu0 %v1399
    %v1910 = vpop.f32.mrb[0].mxu0
    %v1911 = vadd.f32 %v1858, %v1910
    %v1912 = vpop.f32.mrb[0].mxu0
    %v1913 = vadd.f32 %v1860, %v1912
    %v1914 = vpop.f32.mrb[0].mxu0
    %v1915 = vadd.f32 %v1862, %v1914
    %v1916 = vpop.f32.mrb[0].mxu0
    %v1917 = vadd.f32 %v1864, %v1916
    %1918 = vdwg.mxu0
    %1919 = vmatprep.subr.bf16.mxu0 %v1718
    %1920 = vmatpush1.bf16.msra.mxu0 %v1717
    %1921 = vmatprep.subr.bf16.mxu0 %v1720
    %1922 = vmatpush1.bf16.msra.mxu0 %v1719
    %1923 = vmatprep.subr.bf16.mxu0 %v1722
    %1924 = vmatpush1.bf16.msra.mxu0 %v1721
    %1925 = vmatprep.subr.bf16.mxu0 %v1724
    %1926 = vmatpush1.bf16.msra.mxu0 %v1723
    %1927 = vmatprep.subr.bf16.mxu0 %v1726
    %1928 = vmatpush1.bf16.msra.mxu0 %v1725
    %1929 = vmatprep.subr.bf16.mxu0 %v1728
    %1930 = vmatpush1.bf16.msra.mxu0 %v1727
    %1931 = vmatprep.subr.bf16.mxu0 %v1730
    %1932 = vmatpush1.bf16.msra.mxu0 %v1729
    %1933 = vmatprep.subr.bf16.mxu0 %v1732
    %1934 = vmatpush1.bf16.msra.mxu0 %v1731
    %1935 = vmatprep.subr.bf16.mxu0 0
    %1936 = vmatpush1.bf16.msra.mxu0 0
    %1937 = vmatprep.subr.bf16.mxu0 0
    %1938 = vmatpush1.bf16.msra.mxu0 0
    %1939 = vmatprep.subr.bf16.mxu0 0
    %1940 = vmatpush1.bf16.msra.mxu0 0
    %1941 = vmatprep.subr.bf16.mxu0 0
    %1942 = vmatpush1.bf16.msra.mxu0 0
    %1943 = vmatprep.subr.bf16.mxu0 0
    %1944 = vmatpush1.bf16.msra.mxu0 0
    %1945 = vmatprep.subr.bf16.mxu0 0
    %1946 = vmatpush1.bf16.msra.mxu0 0
    %1947 = vmatprep.subr.bf16.mxu0 0
    %1948 = vmatpush1.bf16.msra.mxu0 0
    %1949 = vmatprep.subr.bf16.mxu0 0
    %1950 = vmatpush1.bf16.msra.mxu0 0
    %1951 = vmatprep.mubr.bf16.mxu0 0
    %1952 = vmatmul.mubr.bf16.gmra.mrb[0].mxu0 %v1396
    %v1953 = vpop.f32.mrb[0].mxu0
    %v1954 = vadd.f32 %v1901, %v1953
    %v1955 = vpop.f32.mrb[0].mxu0
    %v1956 = vadd.f32 %v1903, %v1955
    %v1957 = vpop.f32.mrb[0].mxu0
    %v1958 = vadd.f32 %v1905, %v1957
    %v1959 = vpop.f32.mrb[0].mxu0
    %v1960 = vadd.f32 %v1907, %v1959
    %1961 = vmatprep.mubr.bf16.mxu0 0
    %1962 = vmatmul.mubr.bf16.gmra.mrb[0].mxu0 %v1401
    %v1963 = vpop.f32.mrb[0].mxu0
    %v1964 = vadd.f32 %v1911, %v1963
    %v1965 = vpop.f32.mrb[0].mxu0
    %v1966 = vadd.f32 %v1913, %v1965
    %v1967 = vpop.f32.mrb[0].mxu0
    %v1968 = vadd.f32 %v1915, %v1967
    %v1969 = vpop.f32.mrb[0].mxu0
    %v1970 = vadd.f32 %v1917, %v1969
    %1971 = vdwg.mxu0
    %v1972 = vmax.f32 %v1954, %v1956
    %v1973 = vmax.f32 %v1958, %v1960
    %v1974 = vmax.f32 %v1964, %v1966
    %v1975 = vmax.f32 %v1968, %v1970
    %v1976 = vrot.slane %v1207, 2
    %v1977 = vrot.slane %v1208, 2
    %v1978 = vrot.slane %v1209, 2
    %v1979 = vrot.slane %v1210, 2
    %v1980 = vrot.slane %v1211, 2
    %v1981 = vrot.slane %v1212, 2
    %v1982 = vrot.slane %v1213, 2
    %v1983 = vrot.slane %v1214, 2
    %v1984 = vcombine.low %v1207, %v1304
    %v1985 = vcombine.low %v1320, %v1328
    %v1986 = vcombine.low %v1208, %v1305
    %v1987 = vcombine.low %v1321, %v1329
    %v1988 = vcombine.low %v1209, %v1306
    %v1989 = vcombine.low %v1322, %v1330
    %v1990 = vcombine.low %v1210, %v1307
    %v1991 = vcombine.low %v1323, %v1331
    %v1992 = vcombine.low %v1211, %v1308
    %v1993 = vcombine.low %v1324, %v1332
    %v1994 = vcombine.low %v1212, %v1309
    %v1995 = vcombine.low %v1325, %v1333
    %v1996 = vcombine.low %v1213, %v1310
    %v1997 = vcombine.low %v1326, %v1334
    %v1998 = vcombine.low %v1214, %v1311
    %v1999 = vcombine.low %v1327, %v1335
    %v2000 = vcombine.low %v1984, %v1986
    %v2001 = vcombine.high %v1984, %v1986
    %v2002 = vcombine.low %v1985, %v1987
    %v2003 = vcombine.high %v1985, %v1987
    %v2004 = vcombine.low %v1976, %v1977
    %v2005 = vcombine.low %v1988, %v1990
    %v2006 = vcombine.high %v1988, %v1990
    %v2007 = vcombine.low %v1989, %v1991
    %v2008 = vcombine.high %v1989, %v1991
    %v2009 = vcombine.low %v1978, %v1979
    %v2010 = vcombine.low %v1992, %v1994
    %v2011 = vcombine.high %v1992, %v1994
    %v2012 = vcombine.low %v1993, %v1995
    %v2013 = vcombine.high %v1993, %v1995
    %v2014 = vcombine.low %v1980, %v1981
    %v2015 = vcombine.low %v1996, %v1998
    %v2016 = vcombine.high %v1996, %v1998
    %v2017 = vcombine.low %v1997, %v1999
    %v2018 = vcombine.high %v1997, %v1999
    %v2019 = vcombine.low %v1982, %v1983
    %v2040 = vpack.c.bf16 %v2005, %v2000
    %v2041 = vpack.c.bf16 %v2006, %v2001
    %v2042 = vpack.c.bf16 %v2007, %v2002
    %v2043 = vpack.c.bf16 %v2008, %v2003
    %v2044 = vpack.c.bf16 %v2009, %v2004
    %v2045 = vpack.c.bf16 %v2015, %v2010
    %v2046 = vpack.c.bf16 %v2016, %v2011
    %v2047 = vpack.c.bf16 %v2017, %v2012
    %v2048 = vpack.c.bf16 %v2018, %v2013
    %v2049 = vpack.c.bf16 %v2019, %v2014
    %2050 = vmatprep.subr.bf16.mxu0 %v1654
    %2051 = vmatpush1.bf16.msra.mxu0 %v1653
    %2052 = vmatprep.subr.bf16.mxu0 %v1656
    %2053 = vmatpush1.bf16.msra.mxu0 %v1655
    %2054 = vmatprep.subr.bf16.mxu0 %v1658
    %2055 = vmatpush1.bf16.msra.mxu0 %v1657
    %2056 = vmatprep.subr.bf16.mxu0 %v1660
    %2057 = vmatpush1.bf16.msra.mxu0 %v1659
    %2058 = vmatprep.subr.bf16.mxu0 %v1662
    %2059 = vmatpush1.bf16.msra.mxu0 %v1661
    %2060 = vmatprep.subr.bf16.mxu0 %v1664
    %2061 = vmatpush1.bf16.msra.mxu0 %v1663
    %2062 = vmatprep.subr.bf16.mxu0 %v1666
    %2063 = vmatpush1.bf16.msra.mxu0 %v1665
    %2064 = vmatprep.subr.bf16.mxu0 %v1668
    %2065 = vmatpush1.bf16.msra.mxu0 %v1667
    %2066 = vmatprep.subr.bf16.mxu0 %v1670
    %2067 = vmatpush1.bf16.msra.mxu0 %v1669
    %2068 = vmatprep.subr.bf16.mxu0 %v1672
    %2069 = vmatpush1.bf16.msra.mxu0 %v1671
    %2070 = vmatprep.subr.bf16.mxu0 %v1674
    %2071 = vmatpush1.bf16.msra.mxu0 %v1673
    %2072 = vmatprep.subr.bf16.mxu0 %v1676
    %2073 = vmatpush1.bf16.msra.mxu0 %v1675
    %2074 = vmatprep.subr.bf16.mxu0 %v1678
    %2075 = vmatpush1.bf16.msra.mxu0 %v1677
    %2076 = vmatprep.subr.bf16.mxu0 %v1680
    %2077 = vmatpush1.bf16.msra.mxu0 %v1679
    %2078 = vmatprep.subr.bf16.mxu0 %v1682
    %2079 = vmatpush1.bf16.msra.mxu0 %v1681
    %2080 = vmatprep.subr.bf16.mxu0 %v1684
    %2081 = vmatpush1.bf16.msra.mxu0 %v1683
    %2082 = vmatprep.mubr.bf16.mxu0 %v2041
    %2083 = vmatmul.mubr.bf16.gmra.mrb[0].mxu0 %v2040
    %v2084 = vpop.f32.mrb[0].mxu0
    %v2085 = vadd.f32 %v1406, %v2084
    %v2086 = vpop.f32.mrb[0].mxu0
    %v2087 = vadd.f32 %v1410, %v2086
    %v2088 = vpop.f32.mrb[0].mxu0
    %v2089 = vadd.f32 %v1406, %v2088
    %v2090 = vpop.f32.mrb[0].mxu0
    %v2091 = vadd.f32 %v1410, %v2090
    %2092 = vmatprep.mubr.bf16.mxu0 %v2046
    %2093 = vmatmul.mubr.bf16.gmra.mrb[0].mxu0 %v2045
    %v2094 = vpop.f32.mrb[0].mxu0
    %v2095 = vadd.f32 %v1406, %v2094
    %v2096 = vpop.f32.mrb[0].mxu0
    %v2097 = vadd.f32 %v1410, %v2096
    %v2098 = vpop.f32.mrb[0].mxu0
    %v2099 = vadd.f32 %v1406, %v2098
    %v2100 = vpop.f32.mrb[0].mxu0
    %v2101 = vadd.f32 %v1410, %v2100
    %2102 = vdwg.mxu0
    %2103 = vmatprep.subr.bf16.mxu0 %v1686
    %2104 = vmatpush1.bf16.msra.mxu0 %v1685
    %2105 = vmatprep.subr.bf16.mxu0 %v1688
    %2106 = vmatpush1.bf16.msra.mxu0 %v1687
    %2107 = vmatprep.subr.bf16.mxu0 %v1690
    %2108 = vmatpush1.bf16.msra.mxu0 %v1689
    %2109 = vmatprep.subr.bf16.mxu0 %v1692
    %2110 = vmatpush1.bf16.msra.mxu0 %v1691
    %2111 = vmatprep.subr.bf16.mxu0 %v1694
    %2112 = vmatpush1.bf16.msra.mxu0 %v1693
    %2113 = vmatprep.subr.bf16.mxu0 %v1696
    %2114 = vmatpush1.bf16.msra.mxu0 %v1695
    %2115 = vmatprep.subr.bf16.mxu0 %v1698
    %2116 = vmatpush1.bf16.msra.mxu0 %v1697
    %2117 = vmatprep.subr.bf16.mxu0 %v1700
    %2118 = vmatpush1.bf16.msra.mxu0 %v1699
    %2119 = vmatprep.subr.bf16.mxu0 %v1702
    %2120 = vmatpush1.bf16.msra.mxu0 %v1701
    %2121 = vmatprep.subr.bf16.mxu0 %v1704
    %2122 = vmatpush1.bf16.msra.mxu0 %v1703
    %2123 = vmatprep.subr.bf16.mxu0 %v1706
    %2124 = vmatpush1.bf16.msra.mxu0 %v1705
    %2125 = vmatprep.subr.bf16.mxu0 %v1708
    %2126 = vmatpush1.bf16.msra.mxu0 %v1707
    %2127 = vmatprep.subr.bf16.mxu0 %v1710
    %2128 = vmatpush1.bf16.msra.mxu0 %v1709
    %2129 = vmatprep.subr.bf16.mxu0 %v1712
    %2130 = vmatpush1.bf16.msra.mxu0 %v1711
    %2131 = vmatprep.subr.bf16.mxu0 %v1714
    %2132 = vmatpush1.bf16.msra.mxu0 %v1713
    %2133 = vmatprep.subr.bf16.mxu0 %v1716
    %2134 = vmatpush1.bf16.msra.mxu0 %v1715
    %2135 = vmatprep.mubr.bf16.mxu0 %v2043
    %2136 = vmatmul.mubr.bf16.gmra.mrb[0].mxu0 %v2042
    %v2137 = vpop.f32.mrb[0].mxu0
    %v2138 = vadd.f32 %v2085, %v2137
    %v2139 = vpop.f32.mrb[0].mxu0
    %v2140 = vadd.f32 %v2087, %v2139
    %v2141 = vpop.f32.mrb[0].mxu0
    %v2142 = vadd.f32 %v2089, %v2141
    %v2143 = vpop.f32.mrb[0].mxu0
    %v2144 = vadd.f32 %v2091, %v2143
    %2145 = vmatprep.mubr.bf16.mxu0 %v2048
    %2146 = vmatmul.mubr.bf16.gmra.mrb[0].mxu0 %v2047
    %v2147 = vpop.f32.mrb[0].mxu0
    %v2148 = vadd.f32 %v2095, %v2147
    %v2149 = vpop.f32.mrb[0].mxu0
    %v2150 = vadd.f32 %v2097, %v2149
    %v2151 = vpop.f32.mrb[0].mxu0
    %v2152 = vadd.f32 %v2099, %v2151
    %v2153 = vpop.f32.mrb[0].mxu0
    %v2154 = vadd.f32 %v2101, %v2153
    %2155 = vdwg.mxu0
    %2156 = vmatprep.subr.bf16.mxu0 %v1718
    %2157 = vmatpush1.bf16.msra.mxu0 %v1717
    %2158 = vmatprep.subr.bf16.mxu0 %v1720
    %2159 = vmatpush1.bf16.msra.mxu0 %v1719
    %2160 = vmatprep.subr.bf16.mxu0 %v1722
    %2161 = vmatpush1.bf16.msra.mxu0 %v1721
    %2162 = vmatprep.subr.bf16.mxu0 %v1724
    %2163 = vmatpush1.bf16.msra.mxu0 %v1723
    %2164 = vmatprep.subr.bf16.mxu0 %v1726
    %2165 = vmatpush1.bf16.msra.mxu0 %v1725
    %2166 = vmatprep.subr.bf16.mxu0 %v1728
    %2167 = vmatpush1.bf16.msra.mxu0 %v1727
    %2168 = vmatprep.subr.bf16.mxu0 %v1730
    %2169 = vmatpush1.bf16.msra.mxu0 %v1729
    %2170 = vmatprep.subr.bf16.mxu0 %v1732
    %2171 = vmatpush1.bf16.msra.mxu0 %v1731
    %2172 = vmatprep.subr.bf16.mxu0 0
    %2173 = vmatpush1.bf16.msra.mxu0 0
    %2174 = vmatprep.subr.bf16.mxu0 0
    %2175 = vmatpush1.bf16.msra.mxu0 0
    %2176 = vmatprep.subr.bf16.mxu0 0
    %2177 = vmatpush1.bf16.msra.mxu0 0
    %2178 = vmatprep.subr.bf16.mxu0 0
    %2179 = vmatpush1.bf16.msra.mxu0 0
    %2180 = vmatprep.subr.bf16.mxu0 0
    %2181 = vmatpush1.bf16.msra.mxu0 0
    %2182 = vmatprep.subr.bf16.mxu0 0
    %2183 = vmatpush1.bf16.msra.mxu0 0
    %2184 = vmatprep.subr.bf16.mxu0 0
    %2185 = vmatpush1.bf16.msra.mxu0 0
    %2186 = vmatprep.subr.bf16.mxu0 0
    %2187 = vmatpush1.bf16.msra.mxu0 0
    %2188 = vmatprep.mubr.bf16.mxu0 0
    %2189 = vmatmul.mubr.bf16.gmra.mrb[0].mxu0 %v2044
    %v2190 = vpop.f32.mrb[0].mxu0
    %v2191 = vadd.f32 %v2138, %v2190
    %v2192 = vpop.f32.mrb[0].mxu0
    %v2193 = vadd.f32 %v2140, %v2192
    %v2194 = vpop.f32.mrb[0].mxu0
    %v2195 = vadd.f32 %v2142, %v2194
    %v2196 = vpop.f32.mrb[0].mxu0
    %v2197 = vadd.f32 %v2144, %v2196
    %2198 = vmatprep.mubr.bf16.mxu0 0
    %2199 = vmatmul.mubr.bf16.gmra.mrb[0].mxu0 %v2049
    %v2200 = vpop.f32.mrb[0].mxu0
    %v2201 = vadd.f32 %v2148, %v2200
    %v2202 = vpop.f32.mrb[0].mxu0
    %v2203 = vadd.f32 %v2150, %v2202
    %v2204 = vpop.f32.mrb[0].mxu0
    %v2205 = vadd.f32 %v2152, %v2204
    %v2206 = vpop.f32.mrb[0].mxu0
    %v2207 = vadd.f32 %v2154, %v2206
    %2208 = vdwg.mxu0
    %v2209 = vmax.f32 %v2191, %v2193
    %v2210 = vmax.f32 %v2195, %v2197
    %v2211 = vmax.f32 %v2201, %v2203
    %v2212 = vmax.f32 %v2205, %v2207
    %v2213 = vmax.f32 %v1972, %v2209
    %v2214 = vmax.f32 %v1973, %v2210
    %v2215 = vmax.f32 %v1974, %v2211
    %v2216 = vmax.f32 %v1975, %v2212
    %v2217 = vmax.f32 %v2213, 0.0
    %v2218 = vmax.f32 %v2214, 0.0
    %v2219 = vmax.f32 %v2215, 0.0
    %v2220 = vmax.f32 %v2216, 0.0
    %v2222 = vunpack.c.l.s4 1935823168
    %v2223 = vunpack.c.0.s8 %v2222
    %v2224 = vlaneseq
    %v2225 = vshrl.u32 %v2224, 7
    %v2226 = vsub.s32 %v2223, %v2225
    %v2227 = vrot.slane %v2217, %v2226
    %v2229 = vunpack.c.l.s4 1935823168
    %v2230 = vunpack.c.0.s8 %v2229
    %v2231 = vlaneseq
    %v2232 = vshrl.u32 %v2231, 7
    %v2233 = vsub.s32 %v2230, %v2232
    %v2234 = vrot.slane %v2218, %v2233
    %v2236 = vunpack.c.l.s4 1935823168
    %v2237 = vunpack.c.0.s8 %v2236
    %v2238 = vlaneseq
    %v2239 = vshrl.u32 %v2238, 7
    %v2240 = vsub.s32 %v2237, %v2239
    %v2241 = vrot.slane %v2219, %v2240
    %v2243 = vunpack.c.l.s4 1935823168
    %v2244 = vunpack.c.0.s8 %v2243
    %v2245 = vlaneseq
    %v2246 = vshrl.u32 %v2245, 7
    %v2247 = vsub.s32 %v2244, %v2246
    %v2248 = vrot.slane %v2220, %v2247
    %v2253 = vcombine.low %v2227, %v2234
    %v2254 = vcombine.high %v2227, %v2234
    %v2255 = vcombine.low %v2241, %v2248
    %v2256 = vcombine.high %v2241, %v2248
    %v2258 = vunpack.c.l.s4 1983009808
    %v2259 = vunpack.c.0.s8 %v2258
    %v2260 = vlaneseq
    %v2261 = vshrl.u32 %v2260, 7
    %v2262 = vsub.s32 %v2259, %v2261
    %v2263 = vrot.slane %v2253, %v2262
    %v2265 = vunpack.c.l.s4 1983009808
    %v2266 = vunpack.c.0.s8 %v2265
    %v2267 = vlaneseq
    %v2268 = vshrl.u32 %v2267, 7
    %v2269 = vsub.s32 %v2266, %v2268
    %v2270 = vrot.slane %v2254, %v2269
    %v2272 = vunpack.c.l.s4 1983009808
    %v2273 = vunpack.c.0.s8 %v2272
    %v2274 = vlaneseq
    %v2275 = vshrl.u32 %v2274, 7
    %v2276 = vsub.s32 %v2273, %v2275
    %v2277 = vrot.slane %v2255, %v2276
    %v2279 = vunpack.c.l.s4 1983009808
    %v2280 = vunpack.c.0.s8 %v2279
    %v2281 = vlaneseq
    %v2282 = vshrl.u32 %v2281, 7
    %v2283 = vsub.s32 %v2280, %v2282
    %v2284 = vrot.slane %v2256, %v2283
    %v2285 = vcombine.low %v2263, %v2277
    %v2286 = vcombine.high %v2263, %v2277
    %v2287 = vcombine.low %v2270, %v2284
    %v2288 = vcombine.high %v2270, %v2284
    %v2293 = vpack.c.bf16 %v2285, %v2285
    %v2294 = vpack.c.bf16 %v2286, %v2286
    %v2295 = vpack.c.bf16 %v2287, %v2287
    %v2296 = vpack.c.bf16 %v2288, %v2288
    %v2297 = vld [vmem:[#allocation11] sm:$0xf]
    %v2298 = vld [vmem:[#allocation11 + $0x4] sm:$0xf]
    %v2299 = vld [vmem:[#allocation11 + $0x8] sm:$0xf]
    %v2300 = vld [vmem:[#allocation11 + $0xc] sm:$0xf]
    %v2301 = vld [vmem:[#allocation11 + $0x10] sm:$0xf]
    %v2302 = vld [vmem:[#allocation11 + $0x14] sm:$0xf]
    %v2303 = vld [vmem:[#allocation11 + $0x18] sm:$0xf]
    %v2304 = vld [vmem:[#allocation11 + $0x1c] sm:$0xf]
    %v2305 = vld [vmem:[#allocation11 + $0x20] sm:$0xf]
    %v2306 = vld [vmem:[#allocation11 + $0x24] sm:$0xf]
    %v2307 = vld [vmem:[#allocation11 + $0x28] sm:$0xf]
    %v2308 = vld [vmem:[#allocation11 + $0x2c] sm:$0xf]
    %v2309 = vld [vmem:[#allocation11 + $0x30] sm:$0xf]
    %v2310 = vld [vmem:[#allocation11 + $0x34] sm:$0xf]
    %v2311 = vld [vmem:[#allocation11 + $0x38] sm:$0xf]
    %v2312 = vld [vmem:[#allocation11 + $0x3c] sm:$0xf]
    %v2313 = vld [vmem:[#allocation11 + $0x40] sm:$0xf]
    %v2314 = vld [vmem:[#allocation11 + $0x44] sm:$0xf]
    %v2315 = vld [vmem:[#allocation11 + $0x48] sm:$0xf]
    %v2316 = vld [vmem:[#allocation11 + $0x4c] sm:$0xf]
    %v2317 = vld [vmem:[#allocation11 + $0x50] sm:$0xf]
    %v2318 = vld [vmem:[#allocation11 + $0x54] sm:$0xf]
    %v2319 = vld [vmem:[#allocation11 + $0x58] sm:$0xf]
    %v2320 = vld [vmem:[#allocation11 + $0x5c] sm:$0xf]
    %v2321 = vld [vmem:[#allocation11 + $0x60] sm:$0xf]
    %v2322 = vld [vmem:[#allocation11 + $0x64] sm:$0xf]
    %v2323 = vld [vmem:[#allocation11 + $0x68] sm:$0xf]
    %v2324 = vld [vmem:[#allocation11 + $0x6c] sm:$0xf]
    %v2325 = vld [vmem:[#allocation11 + $0x70] sm:$0xf]
    %v2326 = vld [vmem:[#allocation11 + $0x74] sm:$0xf]
    %v2327 = vld [vmem:[#allocation11 + $0x78] sm:$0xf]
    %v2328 = vld [vmem:[#allocation11 + $0x7c] sm:$0xf]
    %v2329 = vld [vmem:[#allocation11 + $0x80] sm:$0xf]
    %v2330 = vld [vmem:[#allocation11 + $0x84] sm:$0xf]
    %v2331 = vld [vmem:[#allocation11 + $0x88] sm:$0xf]
    %v2332 = vld [vmem:[#allocation11 + $0x8c] sm:$0xf]
    %v2333 = vld [vmem:[#allocation11 + $0x90] sm:$0xf]
    %v2334 = vld [vmem:[#allocation11 + $0x94] sm:$0xf]
    %v2335 = vld [vmem:[#allocation11 + $0x98] sm:$0xf]
    %v2336 = vld [vmem:[#allocation11 + $0x9c] sm:$0xf]
    %v2337 = vld [vmem:[#allocation11 + $0xa0] sm:$0xf]
    %v2338 = vld [vmem:[#allocation11 + $0xa4] sm:$0xf]
    %v2339 = vld [vmem:[#allocation11 + $0xa8] sm:$0xf]
    %v2340 = vld [vmem:[#allocation11 + $0xac] sm:$0xf]
    %v2341 = vld [vmem:[#allocation11 + $0xb0] sm:$0xf]
    %v2342 = vld [vmem:[#allocation11 + $0xb4] sm:$0xf]
    %v2343 = vld [vmem:[#allocation11 + $0xb8] sm:$0xf]
    %v2344 = vld [vmem:[#allocation11 + $0xbc] sm:$0xf]
    %v2345 = vld [vmem:[#allocation11 + $0xc0] sm:$0xf]
    %v2346 = vld [vmem:[#allocation11 + $0xc4] sm:$0xf]
    %v2347 = vld [vmem:[#allocation11 + $0xc8] sm:$0xf]
    %v2348 = vld [vmem:[#allocation11 + $0xcc] sm:$0xf]
    %v2349 = vld [vmem:[#allocation11 + $0xd0] sm:$0xf]
    %v2350 = vld [vmem:[#allocation11 + $0xd4] sm:$0xf]
    %v2351 = vld [vmem:[#allocation11 + $0xd8] sm:$0xf]
    %v2352 = vld [vmem:[#allocation11 + $0xdc] sm:$0xf]
    %v2353 = vld [vmem:[#allocation11 + $0xe0] sm:$0xf]
    %v2354 = vld [vmem:[#allocation11 + $0xe4] sm:$0xf]
    %v2355 = vld [vmem:[#allocation11 + $0xe8] sm:$0xf]
    %v2356 = vld [vmem:[#allocation11 + $0xec] sm:$0xf]
    %v2357 = vld [vmem:[#allocation11 + $0xf0] sm:$0xf]
    %v2358 = vld [vmem:[#allocation11 + $0xf4] sm:$0xf]
    %v2359 = vld [vmem:[#allocation11 + $0xf8] sm:$0xf]
    %v2360 = vld [vmem:[#allocation11 + $0xfc] sm:$0xf]
    %v2361 = vld [vmem:[#allocation13] sm:$0x1]
    %v2363 = vlaneseq
    %v2364 = vshrl.u32 %v2363, 7
    %v2365 = vsub.s32 0, %v2364
    %v2366 = vrot.slane %v2361, %v2365
    %v2432 = vunpack.c.l.b16 %v2297
    %v2433 = vunpack.c.l.b16 %v2298
    %v2434 = vunpack.c.l.b16 %v2299
    %v2435 = vunpack.c.l.b16 %v2300
    %v2436 = vunpack.c.l.b16 %v2301
    %v2437 = vunpack.c.l.b16 %v2302
    %v2438 = vunpack.c.l.b16 %v2303
    %v2439 = vunpack.c.l.b16 %v2304
    %v2440 = vunpack.c.l.b16 %v2305
    %v2441 = vunpack.c.l.b16 %v2306
    %v2442 = vunpack.c.l.b16 %v2307
    %v2443 = vunpack.c.l.b16 %v2308
    %v2444 = vunpack.c.l.b16 %v2309
    %v2445 = vunpack.c.l.b16 %v2310
    %v2446 = vunpack.c.l.b16 %v2311
    %v2447 = vunpack.c.l.b16 %v2312
    %v2448 = vunpack.c.l.b16 %v2313
    %v2449 = vunpack.c.l.b16 %v2314
    %v2450 = vunpack.c.l.b16 %v2315
    %v2451 = vunpack.c.l.b16 %v2316
    %v2452 = vunpack.c.l.b16 %v2317
    %v2453 = vunpack.c.l.b16 %v2318
    %v2454 = vunpack.c.l.b16 %v2319
    %v2455 = vunpack.c.l.b16 %v2320
    %v2456 = vunpack.c.l.b16 %v2321
    %v2457 = vunpack.c.l.b16 %v2322
    %v2458 = vunpack.c.l.b16 %v2323
    %v2459 = vunpack.c.l.b16 %v2324
    %v2460 = vunpack.c.l.b16 %v2325
    %v2461 = vunpack.c.l.b16 %v2326
    %v2462 = vunpack.c.l.b16 %v2327
    %v2463 = vunpack.c.l.b16 %v2328
    %v2464 = vunpack.c.l.b16 %v2329
    %v2465 = vunpack.c.l.b16 %v2330
    %v2466 = vunpack.c.l.b16 %v2331
    %v2467 = vunpack.c.l.b16 %v2332
    %v2468 = vunpack.c.l.b16 %v2333
    %v2469 = vunpack.c.l.b16 %v2334
    %v2470 = vunpack.c.l.b16 %v2335
    %v2471 = vunpack.c.l.b16 %v2336
    %v2472 = vunpack.c.l.b16 %v2337
    %v2473 = vunpack.c.l.b16 %v2338
    %v2474 = vunpack.c.l.b16 %v2339
    %v2475 = vunpack.c.l.b16 %v2340
    %v2476 = vunpack.c.l.b16 %v2341
    %v2477 = vunpack.c.l.b16 %v2342
    %v2478 = vunpack.c.l.b16 %v2343
    %v2479 = vunpack.c.l.b16 %v2344
    %v2480 = vunpack.c.l.b16 %v2345
    %v2481 = vunpack.c.l.b16 %v2346
    %v2482 = vunpack.c.l.b16 %v2347
    %v2483 = vunpack.c.l.b16 %v2348
    %v2484 = vunpack.c.l.b16 %v2349
    %v2485 = vunpack.c.l.b16 %v2350
    %v2486 = vunpack.c.l.b16 %v2351
    %v2487 = vunpack.c.l.b16 %v2352
    %v2488 = vunpack.c.l.b16 %v2353
    %v2489 = vunpack.c.l.b16 %v2354
    %v2490 = vunpack.c.l.b16 %v2355
    %v2491 = vunpack.c.l.b16 %v2356
    %v2492 = vunpack.c.l.b16 %v2357
    %v2493 = vunpack.c.l.b16 %v2358
    %v2494 = vunpack.c.l.b16 %v2359
    %v2495 = vunpack.c.l.b16 %v2360
    %v2496 = vpack.c.b16 %v2433, %v2432
    %v2497 = vpack.c.b16 %v2435, %v2434
    %v2498 = vpack.c.b16 %v2437, %v2436
    %v2499 = vpack.c.b16 %v2439, %v2438
    %v2500 = vpack.c.b16 %v2441, %v2440
    %v2501 = vpack.c.b16 %v2443, %v2442
    %v2502 = vpack.c.b16 %v2445, %v2444
    %v2503 = vpack.c.b16 %v2447, %v2446
    %v2504 = vpack.c.b16 %v2449, %v2448
    %v2505 = vpack.c.b16 %v2451, %v2450
    %v2506 = vpack.c.b16 %v2453, %v2452
    %v2507 = vpack.c.b16 %v2455, %v2454
    %v2508 = vpack.c.b16 %v2457, %v2456
    %v2509 = vpack.c.b16 %v2459, %v2458
    %v2510 = vpack.c.b16 %v2461, %v2460
    %v2511 = vpack.c.b16 %v2463, %v2462
    %v2512 = vpack.c.b16 %v2465, %v2464
    %v2513 = vpack.c.b16 %v2467, %v2466
    %v2514 = vpack.c.b16 %v2469, %v2468
    %v2515 = vpack.c.b16 %v2471, %v2470
    %v2516 = vpack.c.b16 %v2473, %v2472
    %v2517 = vpack.c.b16 %v2475, %v2474
    %v2518 = vpack.c.b16 %v2477, %v2476
    %v2519 = vpack.c.b16 %v2479, %v2478
    %v2520 = vpack.c.b16 %v2481, %v2480
    %v2521 = vpack.c.b16 %v2483, %v2482
    %v2522 = vpack.c.b16 %v2485, %v2484
    %v2523 = vpack.c.b16 %v2487, %v2486
    %v2524 = vpack.c.b16 %v2489, %v2488
    %v2525 = vpack.c.b16 %v2491, %v2490
    %v2526 = vpack.c.b16 %v2493, %v2492
    %v2527 = vpack.c.b16 %v2495, %v2494
    %2560 = vmatprep.subr.bf16.mxu0 0
    %2561 = vmatpush1.bf16.msra.mxu0 %v2496
    %2562 = vmatprep.subr.bf16.mxu0 0
    %2563 = vmatpush1.bf16.msra.mxu0 %v2497
    %2564 = vmatprep.subr.bf16.mxu0 0
    %2565 = vmatpush1.bf16.msra.mxu0 %v2498
    %2566 = vmatprep.subr.bf16.mxu0 0
    %2567 = vmatpush1.bf16.msra.mxu0 %v2499
    %2568 = vmatprep.subr.bf16.mxu0 0
    %2569 = vmatpush1.bf16.msra.mxu0 %v2500
    %2570 = vmatprep.subr.bf16.mxu0 0
    %2571 = vmatpush1.bf16.msra.mxu0 %v2501
    %2572 = vmatprep.subr.bf16.mxu0 0
    %2573 = vmatpush1.bf16.msra.mxu0 %v2502
    %2574 = vmatprep.subr.bf16.mxu0 0
    %2575 = vmatpush1.bf16.msra.mxu0 %v2503
    %2576 = vmatprep.subr.bf16.mxu0 0
    %2577 = vmatpush1.bf16.msra.mxu0 %v2504
    %2578 = vmatprep.subr.bf16.mxu0 0
    %2579 = vmatpush1.bf16.msra.mxu0 %v2505
    %2580 = vmatprep.subr.bf16.mxu0 0
    %2581 = vmatpush1.bf16.msra.mxu0 %v2506
    %2582 = vmatprep.subr.bf16.mxu0 0
    %2583 = vmatpush1.bf16.msra.mxu0 %v2507
    %2584 = vmatprep.subr.bf16.mxu0 0
    %2585 = vmatpush1.bf16.msra.mxu0 %v2508
    %2586 = vmatprep.subr.bf16.mxu0 0
    %2587 = vmatpush1.bf16.msra.mxu0 %v2509
    %2588 = vmatprep.subr.bf16.mxu0 0
    %2589 = vmatpush1.bf16.msra.mxu0 %v2510
    %2590 = vmatprep.subr.bf16.mxu0 0
    %2591 = vmatpush1.bf16.msra.mxu0 %v2511
    %2592 = vmatprep.mubr.bf16.mxu0 %v2294
    %2593 = vmatmul.mubr.bf16.gmra.mrb[0].mxu0 %v2293
    %v2594 = vpop.f32.mrb[0].mxu0
    %v2595 = vadd.f32 %v2366, %v2594
    %v2596 = vpop.f32.mrb[0].mxu0
    %v2597 = vpop.f32.mrb[0].mxu0
    %v2598 = vpop.f32.mrb[0].mxu0
    %2599 = vdwg.mxu0
    %2600 = vmatprep.subr.bf16.mxu0 0
    %2601 = vmatpush1.bf16.msra.mxu0 %v2512
    %2602 = vmatprep.subr.bf16.mxu0 0
    %2603 = vmatpush1.bf16.msra.mxu0 %v2513
    %2604 = vmatprep.subr.bf16.mxu0 0
    %2605 = vmatpush1.bf16.msra.mxu0 %v2514
    %2606 = vmatprep.subr.bf16.mxu0 0
    %2607 = vmatpush1.bf16.msra.mxu0 %v2515
    %2608 = vmatprep.subr.bf16.mxu0 0
    %2609 = vmatpush1.bf16.msra.mxu0 %v2516
    %2610 = vmatprep.subr.bf16.mxu0 0
    %2611 = vmatpush1.bf16.msra.mxu0 %v2517
    %2612 = vmatprep.subr.bf16.mxu0 0
    %2613 = vmatpush1.bf16.msra.mxu0 %v2518
    %2614 = vmatprep.subr.bf16.mxu0 0
    %2615 = vmatpush1.bf16.msra.mxu0 %v2519
    %2616 = vmatprep.subr.bf16.mxu0 0
    %2617 = vmatpush1.bf16.msra.mxu0 %v2520
    %2618 = vmatprep.subr.bf16.mxu0 0
    %2619 = vmatpush1.bf16.msra.mxu0 %v2521
    %2620 = vmatprep.subr.bf16.mxu0 0
    %2621 = vmatpush1.bf16.msra.mxu0 %v2522
    %2622 = vmatprep.subr.bf16.mxu0 0
    %2623 = vmatpush1.bf16.msra.mxu0 %v2523
    %2624 = vmatprep.subr.bf16.mxu0 0
    %2625 = vmatpush1.bf16.msra.mxu0 %v2524
    %2626 = vmatprep.subr.bf16.mxu0 0
    %2627 = vmatpush1.bf16.msra.mxu0 %v2525
    %2628 = vmatprep.subr.bf16.mxu0 0
    %2629 = vmatpush1.bf16.msra.mxu0 %v2526
    %2630 = vmatprep.subr.bf16.mxu0 0
    %2631 = vmatpush1.bf16.msra.mxu0 %v2527
    %2632 = vmatprep.mubr.bf16.mxu0 %v2296
    %2633 = vmatmul.mubr.bf16.gmra.mrb[0].mxu0 %v2295
    %v2634 = vpop.f32.mrb[0].mxu0
    %v2635 = vadd.f32 %v2595, %v2634
    %v2636 = vpop.f32.mrb[0].mxu0
    %v2637 = vpop.f32.mrb[0].mxu0
    %v2638 = vpop.f32.mrb[0].mxu0
    %2639 = vdwg.mxu0
    %v2640 = vmax.f32 %v2635, 0.0
    %v2641 = vpack.c.bf16 %v2640, %v2640
    %v2642 = vld [vmem:[#allocation14] sm:$0xf]
    %v2643 = vld [vmem:[#allocation14 + $0x4] sm:$0xf]
    %v2644 = vld [vmem:[#allocation14 + $0x8] sm:$0xf]
    %v2645 = vld [vmem:[#allocation14 + $0xc] sm:$0xf]
    %v2646 = vld [vmem:[#allocation14 + $0x10] sm:$0xf]
    %v2647 = vld [vmem:[#allocation14 + $0x14] sm:$0xf]
    %v2648 = vld [vmem:[#allocation14 + $0x18] sm:$0x1]
    %v2649 = vld [vmem:[#allocation16] sm:$0x1]
    %v2651 = vlaneseq
    %v2652 = vshrl.u32 %v2651, 7
    %v2653 = vsub.s32 0, %v2652
    %v2654 = vrot.slane %v2649, %v2653
    %v2663 = vunpack.c.l.b16 %v2642
    %v2664 = vunpack.c.l.b16 %v2643
    %v2665 = vunpack.c.l.b16 %v2644
    %v2666 = vunpack.c.l.b16 %v2645
    %v2667 = vunpack.c.l.b16 %v2646
    %v2668 = vunpack.c.l.b16 %v2647
    %v2669 = vunpack.c.l.b16 %v2648
    %v2670 = vpack.c.b16 %v2664, %v2663
    %v2671 = vpack.c.b16 %v2666, %v2665
    %v2672 = vpack.c.b16 %v2668, %v2667
    %v2673 = vpack.c.b16 %v2669, %v2669
    %vm2677 = vcmask 408576
    %v2679 = vsel %vm2677, %v2641, 0
    %vm2681 = vcmask 1040384
    %v2683 = vsel %vm2681, %v2673, 0
    %2685 = vmatprep.subr.bf16.mxu0 0
    %2686 = vmatpush1.bf16.msra.mxu0 %v2670
    %2687 = vmatprep.subr.bf16.mxu0 0
    %2688 = vmatpush1.bf16.msra.mxu0 %v2671
    %2689 = vmatprep.subr.bf16.mxu0 0
    %2690 = vmatpush1.bf16.msra.mxu0 %v2672
    %2691 = vmatprep.subr.bf16.mxu0 0
    %2692 = vmatpush1.bf16.msra.mxu0 %v2683
    %2693 = vmatprep.subr.bf16.mxu0 0
    %2694 = vmatpush1.bf16.msra.mxu0 0
    %2695 = vmatprep.subr.bf16.mxu0 0
    %2696 = vmatpush1.bf16.msra.mxu0 0
    %2697 = vmatprep.subr.bf16.mxu0 0
    %2698 = vmatpush1.bf16.msra.mxu0 0
    %2699 = vmatprep.subr.bf16.mxu0 0
    %2700 = vmatpush1.bf16.msra.mxu0 0
    %2701 = vmatprep.subr.bf16.mxu0 0
    %2702 = vmatpush1.bf16.msra.mxu0 0
    %2703 = vmatprep.subr.bf16.mxu0 0
    %2704 = vmatpush1.bf16.msra.mxu0 0
    %2705 = vmatprep.subr.bf16.mxu0 0
    %2706 = vmatpush1.bf16.msra.mxu0 0
    %2707 = vmatprep.subr.bf16.mxu0 0
    %2708 = vmatpush1.bf16.msra.mxu0 0
    %2709 = vmatprep.subr.bf16.mxu0 0
    %2710 = vmatpush1.bf16.msra.mxu0 0
    %2711 = vmatprep.subr.bf16.mxu0 0
    %2712 = vmatpush1.bf16.msra.mxu0 0
    %2713 = vmatprep.subr.bf16.mxu0 0
    %2714 = vmatpush1.bf16.msra.mxu0 0
    %2715 = vmatprep.subr.bf16.mxu0 0
    %2716 = vmatpush1.bf16.msra.mxu0 0
    %2717 = vmatprep.mubr.bf16.mxu0 0
    %2718 = vmatmul.mubr.bf16.gmra.mrb[0].mxu0 %v2679
    %v2719 = vpop.f32.mrb[0].mxu0
    %v2720 = vadd.f32 %v2654, %v2719
    %v2721 = vpop.f32.mrb[0].mxu0
    %v2722 = vpop.f32.mrb[0].mxu0
    %v2723 = vpop.f32.mrb[0].mxu0
    %2724 = vdwg.mxu0
    %vm2725 = vcmask 80896
    %v2726 = vsel %vm2725, %v2720, -inf
    %2727 = vmax.xlane.f32.xlu0 %v2726
    %v2728 = vpop.xlane.xlu0 %2727
    %v2729 = vsub.f32 %v2720, %v2728
    %v2730 = vmul.f32 %v2729, 1.442695
    %v2731 = vpow.pop %v2730
    %v2732 = vsel %vm2725, %v2731, 0.0
    %2733 = vadd.xlane.f32.xlu0 %v2732
    %v2734 = vpop.xlane.xlu0 %2733
    %v2735 = vlog2.pop %v2734
    %v2736 = vmul.f32 %v2735, 0.6931472
    %v2737 = vsub.f32 %v2729, %v2736
    %2738 = vst.msk [vmem:[#allocation17] sm:$0xff] %vm2725, %v2737
    // Predicated region
    $region74: #{tpu_custom_call.1} parent=1 // pred_check
      _
    $region75: #{tpu_custom_call.1} parent=1 // pred_check_branch
      %2740 = sbr.rel (0) target = $region77
    $region76: #{tpu_custom_call.1} parent=1 // pred_region
      %s2742 = ssub.s32 128, 128
      %2743 = vsyncadd [#allocation4], %s2742
      %s2745 = sshll.u32 [#allocation17], 4
      %s2746 = int_to_ptr.vmem [resolvable:$true] %s2745
      %2748 = dma.vmem_to_hbm [thread:$0]  %s2746, 128, %s9, [#allocation4]
    $region77: #{tpu_custom_call.1} parent=1 // pred_fallthru
      _
    // Predicated region
    $region78: #{tpu_custom_call.1} parent=1 // pred_check
      _
    $region79: #{tpu_custom_call.1} parent=1 // pred_check_branch
      %2750 = sbr.rel (0) target = $region81
    $region80: #{tpu_custom_call.1} parent=1 // pred_region
      %2751 = dma.done [#allocation4], 128
    $region81: #{tpu_custom_call.1} parent=1 // pred_fallthru
      _
    %2752 = vsyncpa [#allocation3], 1
    %2753 = vsyncpa [#allocation6], 1
    %2754 = vsyncpa [#allocation9], 1
    %2755 = vsyncpa [#allocation12], 1
    %2756 = vsyncpa [#allocation15], 1
    %2757 = vsyncpa [#allocation4], 1

</llo_original>
